<compile_context>
chip_gen: v5e
topology: v5e:2x2
jax: 0.10.0
libtpu: 0.0.40
codegen_flags: <defaults>
</compile_context>

<pallas_src>
import functools

import jax
import jax.numpy as jnp
from jax import lax
from jax.experimental import pallas as pl
from jax.experimental.pallas import tpu as pltpu


def _round_up(x, m):
    return ((x + m - 1) // m) * m


# ----------------------------------------------------------------------------
# Pallas kernel: GINConv2d (+ fused residual) on a dense kNN graph.
# One (batch, row-tile) per grid step.
# ----------------------------------------------------------------------------
def _gin_res_kernel(x_all_ref, x_rows_ref, nn_ref, w_ref, b_ref, o_ref, *,
                    one_plus_eps, res_scale, col_chunk):
    # x_all_ref:  [1, Np, Cin_p]  bf16 -- all nodes of this batch element
    # x_rows_ref: [1, tN, Cin_p]  f32  -- this row tile (f32 skip + residual)
    # nn_ref:     [1, tN, K]      int32 neighbour ids for this row tile
    # w_ref:      [Cin_p, Cout_p] f32   1x1-conv weight (padded)
    # b_ref:      [1, Cout_p]     f32   conv bias (padded)
    # o_ref:      [1, tN, Cout_p] f32
    tn = o_ref.shape[1]
    np_ = x_all_ref.shape[1]
    k_nb = nn_ref.shape[2]
    cin_p = x_all_ref.shape[2]

    idx = nn_ref[0]                                                   # [tN, K]
    row0 = pl.program_id(1) * tn
    rid = row0 + lax.broadcasted_iota(jnp.int32, (tn, 1), 0)          # global row id

    # Fused adjacency-build + aggregation over column chunks.  The one-hot
    # counts are accumulated in f32 (portable; exact for K <= 256) and cast to
    # bf16 once per chunk right before the MXU.
    agg = jnp.zeros((tn, cin_p), jnp.float32)
    for c0 in range(0, np_, col_chunk):                               # static unroll
        cw = min(col_chunk, np_ - c0)
        jcol = c0 + lax.broadcasted_iota(jnp.int32, (tn, cw), 1)      # column node id
        acc = jnp.zeros((tn, cw), jnp.float32)
        for k in range(k_nb):                                         # K small & static
            acc = acc + (jcol == idx[:, k:k + 1]).astype(jnp.float32)
        acc = jnp.where(jcol == rid, 0.0, acc)                        # remove_self_loops
        x_chunk = x_all_ref[0, c0:c0 + cw, :]                         # [cw, Cin_p] bf16
        agg = agg + jnp.dot(acc.astype(jnp.bfloat16), x_chunk,
                            preferred_element_type=jnp.float32)

    x_rows = x_rows_ref[0]                                            # [tN, Cin_p] f32
    h = one_plus_eps * x_rows + agg
    y = jnp.dot(h, w_ref[...], preferred_element_type=jnp.float32)    # [tN, Cout_p]
    y = jnp.maximum(y + b_ref[...], 0.0)
    if res_scale != 0.0:
        y = y + res_scale * x_rows                 # fused residual (Cin_p == Cout_p)
    o_ref[0] = y.astype(o_ref.dtype)


def gin_conv2d(x_bnc, nn_idx, weight, bias, eps, *, res_scale=0.0,
               tile_n=256, col_chunk=256):
    """GINConv2d forward on a dense graph, optionally fused with the residual.

    x_bnc:  [B, N, Cin] f32 node features (channels last)
    nn_idx: [B, N, K] neighbour indices (edge_index[0]); centre indices are
            implicitly arange(N) in this dense variant.
    weight: [Cin, Cout], bias: [Cout], eps / res_scale: python floats.
    """
    B, N, Cin = x_bnc.shape
    K = nn_idx.shape[-1]
    Cout = weight.shape[1]
    assert K <= 256, "bf16 adjacency counts are exact only for K <= 256"
    if res_scale != 0.0:
        assert Cin == Cout, "fused residual requires Cin == Cout"
    LANE, SUB = 128, 8

    cin_p = _round_up(Cin, LANE)
    cout_p = _round_up(Cout, LANE)

    # Row tiling over N.
    if N <= tile_n:
        tn = _round_up(N, SUB)
        np_ = tn
    else:
        tn = tile_n
        np_ = _round_up(N, tn)
    n_tiles = np_ // tn
    col_chunk = max(SUB, min(_round_up(col_chunk, SUB), np_))

    # Zero-pad channels to full 128-lane width (lane-dense loads/stores; exact
    # since padded W rows/cols and bias entries are zero) and rows to a multiple
    # of the tile (padded rows are sliced off below; they are never referenced
    # as neighbours because real indices are < N).
    x_bf = jnp.zeros((B, np_, cin_p), jnp.bfloat16).at[:, :N, :Cin].set(
        x_bnc.astype(jnp.bfloat16))
    x_f32 = jnp.zeros((B, np_, cin_p), jnp.float32).at[:, :N, :Cin].set(
        x_bnc.astype(jnp.float32))
    nn_p = jnp.zeros((B, np_, K), jnp.int32).at[:, :N, :].set(nn_idx.astype(jnp.int32))
    w_p = jnp.zeros((cin_p, cout_p), jnp.float32).at[:Cin, :Cout].set(
        weight.astype(jnp.float32))
    b_p = jnp.zeros((1, cout_p), jnp.float32).at[0, :Cout].set(bias.astype(jnp.float32))

    # VMEM budget: double-buffered inputs/outputs + in-kernel temporaries.
    # Capped well below v7x's 64 MiB physical VMEM (headroom for compiler
    # internal scratch / semaphores).
    est = (2 * np_ * cin_p * 2                 # bf16 x block (all nodes)
           + 2 * tn * cin_p * 4                # f32 x row tile
           + 2 * tn * _round_up(K, LANE) * 4   # neighbour-index tile (lane padded)
           + 2 * cin_p * cout_p * 4            # weight
           + 2 * SUB * cout_p * 4              # bias
           + 2 * tn * cout_p * 4               # output tile
           + tn * cin_p * 4                    # agg accumulator
           + tn * col_chunk * 12               # acc / jcol / bf16 chunk temporaries
           + 2 * tn * cout_p * 4)              # y temporaries
    vmem_limit = int(min(48 * 2 ** 20, max(32 * 2 ** 20, 2 * est)))

    kernel = functools.partial(
        _gin_res_kernel,
        one_plus_eps=1.0 + float(eps),         # trace-time constants, no SMEM operands
        res_scale=float(res_scale),
        col_chunk=col_chunk)

    dims = ("parallel", "arbitrary") if B > 1 else ("parallel", "parallel")

    out = pl.pallas_call(
        kernel,
        out_shape=jax.ShapeDtypeStruct((B, np_, cout_p), jnp.float32),
        grid=(B, n_tiles),
        in_specs=[
            pl.BlockSpec((1, np_, cin_p), lambda b, t: (b, 0, 0)),   # all nodes, bf16
            pl.BlockSpec((1, tn, cin_p), lambda b, t: (b, t, 0)),    # row tile, f32
            pl.BlockSpec((1, tn, K), lambda b, t: (b, t, 0)),        # neighbour idx tile
            pl.BlockSpec((cin_p, cout_p), lambda b, t: (0, 0)),      # conv weight
            pl.BlockSpec((1, cout_p), lambda b, t: (0, 0)),          # conv bias
        ],
        out_specs=pl.BlockSpec((1, tn, cout_p), lambda b, t: (b, t, 0)),
        compiler_params=pltpu.CompilerParams(
            dimension_semantics=dims,
            vmem_limit_bytes=vmem_limit),
    )(x_bf, x_f32, nn_p, w_p, b_p)

    return out[:, :N, :Cout]


# ----------------------------------------------------------------------------
# ResDynBlock2d = DilatedKnn2d graph + GIN graph conv + residual (fused).
# ----------------------------------------------------------------------------
def dilated_knn_graph(x_bnc, k, dilation=1):
    """DilatedKnn2d(self_loop=True, stochastic=False): k*d nearest neighbours by
    feature distance, then every d-th.  Returns edge_index [2, B, N, k]."""
    # TODO(synk): top_k (kNN graph build) has no clean Pallas TPU equivalent; it stays in plain JAX.
    N = x_bnc.shape[1]
    sq = jnp.sum(x_bnc * x_bnc, axis=-1)                        # [B, N]
    inner = jnp.einsum('bic,bjc->bij', x_bnc, x_bnc)            # [B, N, N]
    dist = sq[:, :, None] - 2.0 * inner + sq[:, None, :]        # squared distances
    _, nn_idx = lax.top_k(-dist, k * dilation)                  # nearest first (incl. self)
    nn_idx = nn_idx[..., ::dilation]                            # dilation
    ctr_idx = jnp.broadcast_to(
        jnp.arange(N, dtype=nn_idx.dtype)[None, :, None], nn_idx.shape)
    return jnp.stack([nn_idx, ctr_idx], axis=0)


def res_dyn_block2d(x_nchw, weight, bias, *, k=9, dilation=1, eps=0.0,
                    res_scale=1.0, tile_n=256, col_chunk=256):
    """ResDynBlock2d forward: DynConv2d(conv='gin')(x) + x * res_scale.  NCHW in/out."""
    x_bnc = jnp.transpose(x_nchw[..., 0], (0, 2, 1))            # [B, N, C]
    edge_index = dilated_knn_graph(x_bnc, k, dilation)
    y = gin_conv2d(x_bnc, edge_index[0], weight, bias, eps,
                   res_scale=res_scale, tile_n=tile_n, col_chunk=col_chunk)
    return jnp.transpose(y, (0, 2, 1))[..., None]               # back to [B, C, N, 1]


# ----------------------------------------------------------------------------
# Pure-JAX references.
# ----------------------------------------------------------------------------
def _gin_reference(x_bnc, nn_idx, ctr_idx, weight, bias, eps):
    x_j = jnp.take_along_axis(x_bnc[:, None, :, :],             # [B, 1, N, C]
                              nn_idx[..., None], axis=2)        # -> [B, N, K, C]
    mask = (nn_idx != ctr_idx)[..., None].astype(jnp.float32)   # remove_self_loops
    agg = jnp.sum(x_j * mask, axis=2)                           # [B, N, C]
    h = (1.0 + eps) * x_bnc + agg
    y = jnp.einsum('bnc,cd->bnd', h, weight) + bias[None, None, :]
    return jnp.maximum(y, 0.0)


def res_dyn_block2d_ref(x_nchw, weight, bias, *, k=9, dilation=1, eps=0.0,
                        res_scale=1.0):
    x_bnc = jnp.transpose(x_nchw[..., 0], (0, 2, 1))
    edge_index = dilated_knn_graph(x_bnc, k, dilation)
    y = _gin_reference(x_bnc, edge_index[0], edge_index[1], weight, bias, eps)
    y = y + res_scale * x_bnc
    return jnp.transpose(y, (0, 2, 1))[..., None]


if __name__ == "__main__":
    # ResDynBlock2d: in_channels == out_channels, kernel_size (k) = 9, dilation = 1.
    B, C, N, K = 2, 16, 256, 9
    eps = 0.0            # GINConv2d default (train_eps=False)
    res_scale = 1.0
    tile_n = 128         # 2 row tiles per batch element -> exercises the N tiling
    col_chunk = 128      # 2 column chunks per row tile -> exercises the fused A-build

    key = jax.random.PRNGKey(0)
    kx, kw, kb = jax.random.split(key, 3)

    # PyTorch NCHW node tensor [B, C, N, 1].
    x = jax.random.normal(kx, (B, C, N, 1), dtype=jnp.float32)

    # Conv2d(C, C, kernel_size=1, bias=True): weight [Cout, Cin, 1, 1] -> [Cin, Cout].
    w4d = jax.random.normal(kw, (C, C, 1, 1), dtype=jnp.float32) * 0.1
    weight = w4d[:, :, 0, 0].T
    bias = jax.random.normal(kb, (C,), dtype=jnp.float32) * 0.1

    out = res_dyn_block2d(x, weight, bias, k=K, dilation=1, eps=eps,
                          res_scale=res_scale, tile_n=tile_n, col_chunk=col_chunk)
    out = jax.block_until_ready(out)

    ref = res_dyn_block2d_ref(x, weight, bias, k=K, dilation=1, eps=eps,
                              res_scale=res_scale)
    assert out.shape == (B, C, N, 1)
    # The aggregation path uses bf16 features inside the kernel, so compare
    # against the f32 reference at bf16-level tolerance (skip + residual are f32).
    assert jnp.allclose(out, ref, atol=3e-2, rtol=3e-2), "mismatch vs reference"

    print("KERNEL_OK")
</pallas_src>

<mosaic_0001>
module attributes {stable_mosaic.version = 11 : i64} {
  func.func @_gin_res_kernel(%arg0: i32, %arg1: i32, %arg2: memref<1x256x128xbf16, #tpu.memory_space<vmem>>, %arg3: memref<1x128x128xf32, #tpu.memory_space<vmem>>, %arg4: memref<1x128x9xi32, #tpu.memory_space<vmem>>, %arg5: memref<128x128xf32, #tpu.memory_space<vmem>>, %arg6: memref<1x128xf32, #tpu.memory_space<vmem>>, %arg7: memref<1x128x128xf32, #tpu.memory_space<vmem>>) attributes {dimension_semantics = [#tpu.dimension_semantics<parallel>, #tpu.dimension_semantics<arbitrary>], iteration_bounds = array<i64: 2, 2>, scalar_prefetch = 0 : i64, scratch_operands = 0 : i64, tpu.core_type = #tpu.core_type<tc>, window_params = [{transform_indices = @transform_0, window_bounds = array<i64: 1, 256, 128>}, {transform_indices = @transform_1, window_bounds = array<i64: 1, 128, 128>}, {transform_indices = @transform_2, window_bounds = array<i64: 1, 128, 9>}, {pipeline_mode = #tpu.pipeline_mode<synchronous>, transform_indices = @transform_3, window_bounds = array<i64: 128, 128>}, {pipeline_mode = #tpu.pipeline_mode<synchronous>, transform_indices = @transform_4, window_bounds = array<i64: 1, 128>}, {transform_indices = @transform_5, window_bounds = array<i64: 1, 128, 128>}]} {
    %c0 = arith.constant 0 : index
    %c0_0 = arith.constant 0 : index
    %c0_1 = arith.constant 0 : index
    %0 = vector.load %arg4[%c0, %c0_0, %c0_1] : memref<1x128x9xi32, #tpu.memory_space<vmem>>, vector<1x128x9xi32>
    %1 = vector.shape_cast %0 : vector<1x128x9xi32> to vector<128x9xi32>
    %c128_i32 = arith.constant 128 : i32
    %2 = arith.muli %arg1, %c128_i32 : i32
    %3 = tpu.iota {dimensions = array<i32: 0>} : vector<128x1xi32>
    %4 = vector.broadcast %2 : i32 to vector<128x1xi32>
    %5 = arith.addi %4, %3 : vector<128x1xi32>
    %cst = arith.constant 0.000000e+00 : f32
    %6 = vector.broadcast %cst : f32 to vector<128x128xf32>
    %7 = tpu.iota {dimensions = array<i32: 1>} : vector<128x128xi32>
    %c0_i32 = arith.constant 0 : i32
    %8 = vector.broadcast %c0_i32 : i32 to vector<128x128xi32>
    %9 = arith.addi %8, %7 : vector<128x128xi32>
    %cst_2 = arith.constant 0.000000e+00 : f32
    %10 = vector.broadcast %cst_2 : f32 to vector<128x128xf32>
    %11 = vector.extract_strided_slice %1 {offsets = [0, 0], sizes = [128, 1], strides = [1, 1]} : vector<128x9xi32> to vector<128x1xi32>
    %12 = vector.broadcast %11 : vector<128x1xi32> to vector<128x128xi32>
    %13 = arith.cmpi eq, %9, %12 : vector<128x128xi32>
    %14 = arith.extui %13 : vector<128x128xi1> to vector<128x128xi32>
    %15 = arith.sitofp %14 : vector<128x128xi32> to vector<128x128xf32>
    %16 = arith.addf %10, %15 : vector<128x128xf32>
    %17 = vector.extract_strided_slice %1 {offsets = [0, 1], sizes = [128, 1], strides = [1, 1]} : vector<128x9xi32> to vector<128x1xi32>
    %18 = vector.broadcast %17 : vector<128x1xi32> to vector<128x128xi32>
    %19 = arith.cmpi eq, %9, %18 : vector<128x128xi32>
    %20 = arith.extui %19 : vector<128x128xi1> to vector<128x128xi32>
    %21 = arith.sitofp %20 : vector<128x128xi32> to vector<128x128xf32>
    %22 = arith.addf %16, %21 : vector<128x128xf32>
    %23 = vector.extract_strided_slice %1 {offsets = [0, 2], sizes = [128, 1], strides = [1, 1]} : vector<128x9xi32> to vector<128x1xi32>
    %24 = vector.broadcast %23 : vector<128x1xi32> to vector<128x128xi32>
    %25 = arith.cmpi eq, %9, %24 : vector<128x128xi32>
    %26 = arith.extui %25 : vector<128x128xi1> to vector<128x128xi32>
    %27 = arith.sitofp %26 : vector<128x128xi32> to vector<128x128xf32>
    %28 = arith.addf %22, %27 : vector<128x128xf32>
    %29 = vector.extract_strided_slice %1 {offsets = [0, 3], sizes = [128, 1], strides = [1, 1]} : vector<128x9xi32> to vector<128x1xi32>
    %30 = vector.broadcast %29 : vector<128x1xi32> to vector<128x128xi32>
    %31 = arith.cmpi eq, %9, %30 : vector<128x128xi32>
    %32 = arith.extui %31 : vector<128x128xi1> to vector<128x128xi32>
    %33 = arith.sitofp %32 : vector<128x128xi32> to vector<128x128xf32>
    %34 = arith.addf %28, %33 : vector<128x128xf32>
    %35 = vector.extract_strided_slice %1 {offsets = [0, 4], sizes = [128, 1], strides = [1, 1]} : vector<128x9xi32> to vector<128x1xi32>
    %36 = vector.broadcast %35 : vector<128x1xi32> to vector<128x128xi32>
    %37 = arith.cmpi eq, %9, %36 : vector<128x128xi32>
    %38 = arith.extui %37 : vector<128x128xi1> to vector<128x128xi32>
    %39 = arith.sitofp %38 : vector<128x128xi32> to vector<128x128xf32>
    %40 = arith.addf %34, %39 : vector<128x128xf32>
    %41 = vector.extract_strided_slice %1 {offsets = [0, 5], sizes = [128, 1], strides = [1, 1]} : vector<128x9xi32> to vector<128x1xi32>
    %42 = vector.broadcast %41 : vector<128x1xi32> to vector<128x128xi32>
    %43 = arith.cmpi eq, %9, %42 : vector<128x128xi32>
    %44 = arith.extui %43 : vector<128x128xi1> to vector<128x128xi32>
    %45 = arith.sitofp %44 : vector<128x128xi32> to vector<128x128xf32>
    %46 = arith.addf %40, %45 : vector<128x128xf32>
    %47 = vector.extract_strided_slice %1 {offsets = [0, 6], sizes = [128, 1], strides = [1, 1]} : vector<128x9xi32> to vector<128x1xi32>
    %48 = vector.broadcast %47 : vector<128x1xi32> to vector<128x128xi32>
    %49 = arith.cmpi eq, %9, %48 : vector<128x128xi32>
    %50 = arith.extui %49 : vector<128x128xi1> to vector<128x128xi32>
    %51 = arith.sitofp %50 : vector<128x128xi32> to vector<128x128xf32>
    %52 = arith.addf %46, %51 : vector<128x128xf32>
    %53 = vector.extract_strided_slice %1 {offsets = [0, 7], sizes = [128, 1], strides = [1, 1]} : vector<128x9xi32> to vector<128x1xi32>
    %54 = vector.broadcast %53 : vector<128x1xi32> to vector<128x128xi32>
    %55 = arith.cmpi eq, %9, %54 : vector<128x128xi32>
    %56 = arith.extui %55 : vector<128x128xi1> to vector<128x128xi32>
    %57 = arith.sitofp %56 : vector<128x128xi32> to vector<128x128xf32>
    %58 = arith.addf %52, %57 : vector<128x128xf32>
    %59 = vector.extract_strided_slice %1 {offsets = [0, 8], sizes = [128, 1], strides = [1, 1]} : vector<128x9xi32> to vector<128x1xi32>
    %60 = vector.broadcast %59 : vector<128x1xi32> to vector<128x128xi32>
    %61 = arith.cmpi eq, %9, %60 : vector<128x128xi32>
    %62 = arith.extui %61 : vector<128x128xi1> to vector<128x128xi32>
    %63 = arith.sitofp %62 : vector<128x128xi32> to vector<128x128xf32>
    %64 = arith.addf %58, %63 : vector<128x128xf32>
    %65 = vector.broadcast %5 : vector<128x1xi32> to vector<128x128xi32>
    %66 = arith.cmpi eq, %9, %65 : vector<128x128xi32>
    %cst_3 = arith.constant 0.000000e+00 : f32
    %67 = vector.broadcast %cst_3 : f32 to vector<128x128xf32>
    %68 = arith.select %66, %67, %64 : vector<128x128xi1>, vector<128x128xf32>
    %c0_4 = arith.constant 0 : index
    %c0_5 = arith.constant 0 : index
    %c0_6 = arith.constant 0 : index
    %69 = vector.load %arg2[%c0_4, %c0_5, %c0_6] : memref<1x256x128xbf16, #tpu.memory_space<vmem>>, vector<1x128x128xbf16>
    %70 = vector.shape_cast %69 : vector<1x128x128xbf16> to vector<128x128xbf16>
    %71 = arith.truncf %68 : vector<128x128xf32> to vector<128x128xbf16>
    %cst_7 = arith.constant dense<0.000000e+00> : vector<128x128xf32>
    %72 = tpu.matmul %71, %70, %cst_7 {dimension_numbers = #tpu.dot_dimension_numbers<[1], [0], [0], [1], [0, 0, 1, 1], [], []>} : vector<128x128xbf16>, vector<128x128xbf16>, vector<128x128xf32> -> vector<128x128xf32>
    %73 = arith.addf %6, %72 : vector<128x128xf32>
    %74 = tpu.iota {dimensions = array<i32: 1>} : vector<128x128xi32>
    %c128_i32_8 = arith.constant 128 : i32
    %75 = vector.broadcast %c128_i32_8 : i32 to vector<128x128xi32>
    %76 = arith.addi %75, %74 : vector<128x128xi32>
    %cst_9 = arith.constant 0.000000e+00 : f32
    %77 = vector.broadcast %cst_9 : f32 to vector<128x128xf32>
    %78 = vector.extract_strided_slice %1 {offsets = [0, 0], sizes = [128, 1], strides = [1, 1]} : vector<128x9xi32> to vector<128x1xi32>
    %79 = vector.broadcast %78 : vector<128x1xi32> to vector<128x128xi32>
    %80 = arith.cmpi eq, %76, %79 : vector<128x128xi32>
    %81 = arith.extui %80 : vector<128x128xi1> to vector<128x128xi32>
    %82 = arith.sitofp %81 : vector<128x128xi32> to vector<128x128xf32>
    %83 = arith.addf %77, %82 : vector<128x128xf32>
    %84 = vector.extract_strided_slice %1 {offsets = [0, 1], sizes = [128, 1], strides = [1, 1]} : vector<128x9xi32> to vector<128x1xi32>
    %85 = vector.broadcast %84 : vector<128x1xi32> to vector<128x128xi32>
    %86 = arith.cmpi eq, %76, %85 : vector<128x128xi32>
    %87 = arith.extui %86 : vector<128x128xi1> to vector<128x128xi32>
    %88 = arith.sitofp %87 : vector<128x128xi32> to vector<128x128xf32>
    %89 = arith.addf %83, %88 : vector<128x128xf32>
    %90 = vector.extract_strided_slice %1 {offsets = [0, 2], sizes = [128, 1], strides = [1, 1]} : vector<128x9xi32> to vector<128x1xi32>
    %91 = vector.broadcast %90 : vector<128x1xi32> to vector<128x128xi32>
    %92 = arith.cmpi eq, %76, %91 : vector<128x128xi32>
    %93 = arith.extui %92 : vector<128x128xi1> to vector<128x128xi32>
    %94 = arith.sitofp %93 : vector<128x128xi32> to vector<128x128xf32>
    %95 = arith.addf %89, %94 : vector<128x128xf32>
    %96 = vector.extract_strided_slice %1 {offsets = [0, 3], sizes = [128, 1], strides = [1, 1]} : vector<128x9xi32> to vector<128x1xi32>
    %97 = vector.broadcast %96 : vector<128x1xi32> to vector<128x128xi32>
    %98 = arith.cmpi eq, %76, %97 : vector<128x128xi32>
    %99 = arith.extui %98 : vector<128x128xi1> to vector<128x128xi32>
    %100 = arith.sitofp %99 : vector<128x128xi32> to vector<128x128xf32>
    %101 = arith.addf %95, %100 : vector<128x128xf32>
    %102 = vector.extract_strided_slice %1 {offsets = [0, 4], sizes = [128, 1], strides = [1, 1]} : vector<128x9xi32> to vector<128x1xi32>
    %103 = vector.broadcast %102 : vector<128x1xi32> to vector<128x128xi32>
    %104 = arith.cmpi eq, %76, %103 : vector<128x128xi32>
    %105 = arith.extui %104 : vector<128x128xi1> to vector<128x128xi32>
    %106 = arith.sitofp %105 : vector<128x128xi32> to vector<128x128xf32>
    %107 = arith.addf %101, %106 : vector<128x128xf32>
    %108 = vector.extract_strided_slice %1 {offsets = [0, 5], sizes = [128, 1], strides = [1, 1]} : vector<128x9xi32> to vector<128x1xi32>
    %109 = vector.broadcast %108 : vector<128x1xi32> to vector<128x128xi32>
    %110 = arith.cmpi eq, %76, %109 : vector<128x128xi32>
    %111 = arith.extui %110 : vector<128x128xi1> to vector<128x128xi32>
    %112 = arith.sitofp %111 : vector<128x128xi32> to vector<128x128xf32>
    %113 = arith.addf %107, %112 : vector<128x128xf32>
    %114 = vector.extract_strided_slice %1 {offsets = [0, 6], sizes = [128, 1], strides = [1, 1]} : vector<128x9xi32> to vector<128x1xi32>
    %115 = vector.broadcast %114 : vector<128x1xi32> to vector<128x128xi32>
    %116 = arith.cmpi eq, %76, %115 : vector<128x128xi32>
    %117 = arith.extui %116 : vector<128x128xi1> to vector<128x128xi32>
    %118 = arith.sitofp %117 : vector<128x128xi32> to vector<128x128xf32>
    %119 = arith.addf %113, %118 : vector<128x128xf32>
    %120 = vector.extract_strided_slice %1 {offsets = [0, 7], sizes = [128, 1], strides = [1, 1]} : vector<128x9xi32> to vector<128x1xi32>
    %121 = vector.broadcast %120 : vector<128x1xi32> to vector<128x128xi32>
    %122 = arith.cmpi eq, %76, %121 : vector<128x128xi32>
    %123 = arith.extui %122 : vector<128x128xi1> to vector<128x128xi32>
    %124 = arith.sitofp %123 : vector<128x128xi32> to vector<128x128xf32>
    %125 = arith.addf %119, %124 : vector<128x128xf32>
    %126 = vector.extract_strided_slice %1 {offsets = [0, 8], sizes = [128, 1], strides = [1, 1]} : vector<128x9xi32> to vector<128x1xi32>
    %127 = vector.broadcast %126 : vector<128x1xi32> to vector<128x128xi32>
    %128 = arith.cmpi eq, %76, %127 : vector<128x128xi32>
    %129 = arith.extui %128 : vector<128x128xi1> to vector<128x128xi32>
    %130 = arith.sitofp %129 : vector<128x128xi32> to vector<128x128xf32>
    %131 = arith.addf %125, %130 : vector<128x128xf32>
    %132 = vector.broadcast %5 : vector<128x1xi32> to vector<128x128xi32>
    %133 = arith.cmpi eq, %76, %132 : vector<128x128xi32>
    %cst_10 = arith.constant 0.000000e+00 : f32
    %134 = vector.broadcast %cst_10 : f32 to vector<128x128xf32>
    %135 = arith.select %133, %134, %131 : vector<128x128xi1>, vector<128x128xf32>
    %c0_11 = arith.constant 0 : index
    %c128 = arith.constant 128 : index
    %c0_12 = arith.constant 0 : index
    %136 = vector.load %arg2[%c0_11, %c128, %c0_12] : memref<1x256x128xbf16, #tpu.memory_space<vmem>>, vector<1x128x128xbf16>
    %137 = vector.shape_cast %136 : vector<1x128x128xbf16> to vector<128x128xbf16>
    %138 = arith.truncf %135 : vector<128x128xf32> to vector<128x128xbf16>
    %cst_13 = arith.constant dense<0.000000e+00> : vector<128x128xf32>
    %139 = tpu.matmul %138, %137, %cst_13 {dimension_numbers = #tpu.dot_dimension_numbers<[1], [0], [0], [1], [0, 0, 1, 1], [], []>} : vector<128x128xbf16>, vector<128x128xbf16>, vector<128x128xf32> -> vector<128x128xf32>
    %140 = arith.addf %73, %139 : vector<128x128xf32>
    %c0_14 = arith.constant 0 : index
    %c0_15 = arith.constant 0 : index
    %c0_16 = arith.constant 0 : index
    %141 = vector.load %arg3[%c0_14, %c0_15, %c0_16] : memref<1x128x128xf32, #tpu.memory_space<vmem>>, vector<1x128x128xf32>
    %142 = vector.shape_cast %141 : vector<1x128x128xf32> to vector<128x128xf32>
    %cst_17 = arith.constant 1.000000e+00 : f32
    %143 = vector.broadcast %cst_17 : f32 to vector<128x128xf32>
    %144 = arith.mulf %143, %142 : vector<128x128xf32>
    %145 = arith.addf %144, %140 : vector<128x128xf32>
    %c0_18 = arith.constant 0 : index
    %c0_19 = arith.constant 0 : index
    %146 = vector.load %arg5[%c0_18, %c0_19] : memref<128x128xf32, #tpu.memory_space<vmem>>, vector<128x128xf32>
    %cst_20 = arith.constant dense<0.000000e+00> : vector<128x128xf32>
    %147 = tpu.matmul %145, %146, %cst_20 {dimension_numbers = #tpu.dot_dimension_numbers<[1], [0], [0], [1], [0, 0, 1, 1], [], []>} : vector<128x128xf32>, vector<128x128xf32>, vector<128x128xf32> -> vector<128x128xf32>
    %c0_21 = arith.constant 0 : index
    %c0_22 = arith.constant 0 : index
    %148 = vector.load %arg6[%c0_21, %c0_22] : memref<1x128xf32, #tpu.memory_space<vmem>>, vector<1x128xf32>
    %149 = vector.broadcast %148 : vector<1x128xf32> to vector<128x128xf32>
    %150 = arith.addf %147, %149 : vector<128x128xf32>
    %cst_23 = arith.constant 0.000000e+00 : f32
    %151 = vector.broadcast %cst_23 : f32 to vector<128x128xf32>
    %152 = arith.maximumf %150, %151 : vector<128x128xf32>
    %cst_24 = arith.constant 1.000000e+00 : f32
    %153 = vector.broadcast %cst_24 : f32 to vector<128x128xf32>
    %154 = arith.mulf %153, %142 : vector<128x128xf32>
    %155 = arith.addf %152, %154 : vector<128x128xf32>
    %c0_25 = arith.constant 0 : index
    %c0_26 = arith.constant 0 : index
    %c0_27 = arith.constant 0 : index
    %156 = vector.load %arg7[%c0_25, %c0_26, %c0_27] : memref<1x128x128xf32, #tpu.memory_space<vmem>>, vector<1x128x128xf32>
    %157 = vector.shape_cast %156 : vector<1x128x128xf32> to vector<128x128xf32>
    %158 = vector.shape_cast %155 : vector<128x128xf32> to vector<1x128x128xf32>
    tpu.vector_store %arg7[%c0_25, %c0_26, %c0_27], %158 {strides = array<i32>} : memref<1x128x128xf32, #tpu.memory_space<vmem>>, vector<1x128x128xf32>,
    return
  }
  func.func @transform_0(%arg0: i32, %arg1: i32) -> (i32, i32, i32) {
    %c0_i32 = arith.constant 0 : i32
    %c0_i32_0 = arith.constant 0 : i32
    %c0_i32_1 = arith.constant 0 : i32
    return %arg0, %c0_i32, %c0_i32_0 : i32, i32, i32
  }
  func.func @transform_1(%arg0: i32, %arg1: i32) -> (i32, i32, i32) {
    %c0_i32 = arith.constant 0 : i32
    %c0_i32_0 = arith.constant 0 : i32
    return %arg0, %arg1, %c0_i32 : i32, i32, i32
  }
  func.func @transform_2(%arg0: i32, %arg1: i32) -> (i32, i32, i32) {
    %c0_i32 = arith.constant 0 : i32
    %c0_i32_0 = arith.constant 0 : i32
    return %arg0, %arg1, %c0_i32 : i32, i32, i32
  }
  func.func @transform_3(%arg0: i32, %arg1: i32) -> (i32, i32) {
    %c0_i32 = arith.constant 0 : i32
    %c0_i32_0 = arith.constant 0 : i32
    %c0_i32_1 = arith.constant 0 : i32
    return %c0_i32, %c0_i32_0 : i32, i32
  }
  func.func @transform_4(%arg0: i32, %arg1: i32) -> (i32, i32) {
    %c0_i32 = arith.constant 0 : i32
    %c0_i32_0 = arith.constant 0 : i32
    %c0_i32_1 = arith.constant 0 : i32
    return %c0_i32, %c0_i32_0 : i32, i32
  }
  func.func @transform_5(%arg0: i32, %arg1: i32) -> (i32, i32, i32) {
    %c0_i32 = arith.constant 0 : i32
    %c0_i32_0 = arith.constant 0 : i32
    return %arg0, %arg1, %c0_i32 : i32, i32, i32
  }
}

</mosaic_0001>

<llo_original>
// kernel: tpu_custom_call.1
$region0: #{tpu_custom_call.1}
  #allocation0 [shape = 'u32[]', space=smem, size = 0x4, offset = 0x4, fixed_abs, tag = 'smem constant byte address 0x4 - core index']
  #allocation1 [shape = 'u32[72,128]{1,0:T(1,128)}', space=vmem, size = 0x9000, scoped, tag = 'internal scratch']
  %s0 = inlined_call_operand.hbm [shape: bf16[2,256,128], index: 0, kind: input, shape index: {}]
  %s1 = inlined_call_operand.vmem [shape: f32[2,256,128], index: 1, kind: input, shape index: {}]
  %s2 = inlined_call_operand.vmem [shape: s32[2,256,9], index: 2, kind: input, shape index: {}]
  %s3 = inlined_call_operand.hbm [shape: f32[128,128], index: 3, kind: input, shape index: {}]
  %s4 = inlined_call_operand.vmem [shape: f32[1,128], index: 4, kind: input, shape index: {}]
  %s5 = inlined_call_operand.hbm [shape: f32[2,256,128], index: 5, kind: output, shape index: {}]
  %s6 = sld [smem:[#allocation0]]
  $region61: #{tpu_custom_call.1} parent=0
    _
  %s8 = ssub.s32 1, %s6
  %s9 = scalar_select 0, %s8, %s6
  $region1: #{tpu_custom_call.1} parent=0
    #allocation2 [shape = 'u8[131072]{0}', space=vmem, size = 0x20000, scoped, tag = 'input window, operand 0']
    #allocation3 [shape = 's32[2]{0}', space=sflag, size = 0x8, scoped, tag = 'scoped memory for tpu_custom_call.1']
    #allocation4 [shape = 's32[2]{0}', space=sflag, size = 0x8, scoped, tag = 'scoped memory for tpu_custom_call.1']
    #allocation5 [shape = 'u8[65536]{0}', space=vmem, size = 0x10000, scoped, tag = 'input window, operand 3, single buffered']
    #allocation6 [shape = 's32[1]{0}', space=sflag, size = 0x4, scoped, tag = 'scoped memory for tpu_custom_call.1']
    #allocation7 [shape = 'u8[131072]{0}', space=vmem, size = 0x20000, scoped, tag = 'output window, operand 0']
    %10 = vsyncpa [#allocation3], 0
    %s11 = scalar_lea.sflag [#allocation3], 1
    %12 = vsyncpa %s11, 0
    %13 = vsyncpa [#allocation6], 0
    %14 = vsyncpa [#allocation4], 0
    %s15 = scalar_lea.sflag [#allocation4], 1
    %16 = vsyncpa %s15, 0
    loop: start=0, step=1, limit=6
    $region2: #{tpu_custom_call.1} parent=1 // loop_pre_header
      _
    $region3: #{tpu_custom_call.1} parent=1 // loop_header
      %s18 = sphi 0, %s22
      %p19 = scmp.ge.s32.totalorder %s18, 6
      %s25 = sphi 0, %s37
      %s26 = sphi 0, %s33
      %s27 = sphi 0, %s25
      %s28 = sphi 0, %s26
      %s29 = sphi 0, %s27
      %s30 = sphi 0, %s28
      %s40 = sphi 0, %s42
      %s43 = sphi 0, %s40
      %s44 = sphi 0, %s43
      %s60 = sphi 0, %s44
      %s68 = sphi 0, %s70
      %s71 = sphi 0, %s68
      %s72 = sphi 0, %s71
      %s88 = sphi 0, %s72
      %s96 = sphi 0, %s98
      %s99 = sphi 0, %s96
      %s100 = sphi 0, %s99
      %s116 = sphi 0, %s100
      %s120 = sphi 0, %s120
      %s122 = sphi 0, %s120
      %s123 = sphi 0, %s122
      %s137 = sphi 0, %s123
      %s141 = sphi 0, %s141
      %s143 = sphi 0, %s141
      %s144 = sphi 0, %s143
      %s158 = sphi 0, %s144
      %s166 = sphi 0, %s168
      %s169 = sphi 0, %s166
      %s170 = sphi 0, %s169
      %s186 = sphi 0, %s170
    $region4: #{tpu_custom_call.1} parent=1 // loop_header_branch
      %21 = sbr.rel (%p19) target = $region8
    $region5: #{tpu_custom_call.1} parent=1 // loop_body
      %s23 = ssub.s32 %s18, 1
      %s24 = ssub.s32 %s18, 2
      %s31 = sadd.s32 1, %s26
      %p32 = scmp.ge.s32.totalorder %s31, 2
      %s33 = scalar_select %p32, 0, %s31
      %s34 = sadd.s32 1, %s25
      %s35 = scalar_select %p32, %s34, %s25
      %p36 = scmp.ge.s32.totalorder %s35, 2
      %s37 = scalar_select %p36, 0, %s35
      %s38 = ssub.s32 %s25, %s37
      %p39 = scmp.eq.s32.totalorder %s38, 0
      %s41 = sadd.s32 %s40, 1
      %s42 = scalar_select %p39, %s40, %s41
      %p45 = pneg %p39
      %p46 = scmp.eq.s32.totalorder %s18, 3
      %p47 = por %p45, %p46
      %p48 = scmp.ne.s32.totalorder %s40, %s43
      %p49 = scmp.eq.s32.totalorder %s18, 0
      %p50 = por %p48, %p49
      %p51 = scmp.ne.s32.totalorder %s40, %s43
      %p52 = scmp.eq.s32.totalorder %s23, 3
      %p53 = por %p51, %p52
      %p54 = scmp.ne.s32.totalorder %s43, %s44
      %p55 = scmp.eq.s32.totalorder %s23, 0
      %p56 = por %p54, %p55
      %p57 = scmp.ne.s32.totalorder %s43, %s44
      %p58 = scmp.eq.s32.totalorder %s24, 3
      %p59 = por %p57, %p58
      %p61 = scmp.ne.s32.totalorder %s44, %s60
      %p62 = scmp.eq.s32.totalorder %s24, 0
      %p63 = por %p61, %p62
      %s64 = ssub.s32 %s25, %s37
      %s65 = ssub.s32 %s26, %s33
      %s66 = sor.u32 %s64, %s65
      %p67 = scmp.eq.s32.totalorder %s66, 0
      %s69 = sadd.s32 %s68, 1
      %s70 = scalar_select %p67, %s68, %s69
      %p73 = pneg %p67
      %p74 = scmp.eq.s32.totalorder %s18, 3
      %p75 = por %p73, %p74
      %p76 = scmp.ne.s32.totalorder %s68, %s71
      %p77 = scmp.eq.s32.totalorder %s18, 0
      %p78 = por %p76, %p77
      %p79 = scmp.ne.s32.totalorder %s68, %s71
      %p80 = scmp.eq.s32.totalorder %s23, 3
      %p81 = por %p79, %p80
      %p82 = scmp.ne.s32.totalorder %s71, %s72
      %p83 = scmp.eq.s32.totalorder %s23, 0
      %p84 = por %p82, %p83
      %p85 = scmp.ne.s32.totalorder %s71, %s72
      %p86 = scmp.eq.s32.totalorder %s24, 3
      %p87 = por %p85, %p86
      %p89 = scmp.ne.s32.totalorder %s72, %s88
      %p90 = scmp.eq.s32.totalorder %s24, 0
      %p91 = por %p89, %p90
      %s92 = ssub.s32 %s25, %s37
      %s93 = ssub.s32 %s26, %s33
      %s94 = sor.u32 %s92, %s93
      %p95 = scmp.eq.s32.totalorder %s94, 0
      %s97 = sadd.s32 %s96, 1
      %s98 = scalar_select %p95, %s96, %s97
      %p101 = pneg %p95
      %p102 = scmp.eq.s32.totalorder %s18, 3
      %p103 = por %p101, %p102
      %p104 = scmp.ne.s32.totalorder %s96, %s99
      %p105 = scmp.eq.s32.totalorder %s18, 0
      %p106 = por %p104, %p105
      %p107 = scmp.ne.s32.totalorder %s96, %s99
      %p108 = scmp.eq.s32.totalorder %s23, 3
      %p109 = por %p107, %p108
      %p110 = scmp.ne.s32.totalorder %s99, %s100
      %p111 = scmp.eq.s32.totalorder %s23, 0
      %p112 = por %p110, %p111
      %p113 = scmp.ne.s32.totalorder %s99, %s100
      %p114 = scmp.eq.s32.totalorder %s24, 3
      %p115 = por %p113, %p114
      %p117 = scmp.ne.s32.totalorder %s100, %s116
      %p118 = scmp.eq.s32.totalorder %s24, 0
      %p119 = por %p117, %p118
      %s121 = sadd.s32 %s120, 1
      %p124 = scmp.eq.s32.totalorder %s18, 3
      %p125 = scmp.ne.s32.totalorder %s120, %s122
      %p126 = scmp.eq.s32.totalorder %s18, 0
      %p127 = por %p125, %p126
      %p128 = scmp.ne.s32.totalorder %s120, %s122
      %p129 = scmp.eq.s32.totalorder %s23, 3
      %p130 = por %p128, %p129
      %p131 = scmp.ne.s32.totalorder %s122, %s123
      %p132 = scmp.eq.s32.totalorder %s23, 0
      %p133 = por %p131, %p132
      %p134 = scmp.ne.s32.totalorder %s122, %s123
      %p135 = scmp.eq.s32.totalorder %s24, 3
      %p136 = por %p134, %p135
      %p138 = scmp.ne.s32.totalorder %s123, %s137
      %p139 = scmp.eq.s32.totalorder %s24, 0
      %p140 = por %p138, %p139
      %s142 = sadd.s32 %s141, 1
      %p145 = scmp.eq.s32.totalorder %s18, 3
      %p146 = scmp.ne.s32.totalorder %s141, %s143
      %p147 = scmp.eq.s32.totalorder %s18, 0
      %p148 = por %p146, %p147
      %p149 = scmp.ne.s32.totalorder %s141, %s143
      %p150 = scmp.eq.s32.totalorder %s23, 3
      %p151 = por %p149, %p150
      %p152 = scmp.ne.s32.totalorder %s143, %s144
      %p153 = scmp.eq.s32.totalorder %s23, 0
      %p154 = por %p152, %p153
      %p155 = scmp.ne.s32.totalorder %s143, %s144
      %p156 = scmp.eq.s32.totalorder %s24, 3
      %p157 = por %p155, %p156
      %p159 = scmp.ne.s32.totalorder %s144, %s158
      %p160 = scmp.eq.s32.totalorder %s24, 0
      %p161 = por %p159, %p160
      %s162 = ssub.s32 %s25, %s37
      %s163 = ssub.s32 %s26, %s33
      %s164 = sor.u32 %s162, %s163
      %p165 = scmp.eq.s32.totalorder %s164, 0
      %s167 = sadd.s32 %s166, 1
      %s168 = scalar_select %p165, %s166, %s167
      %p171 = pneg %p165
      %p172 = scmp.eq.s32.totalorder %s18, 3
      %p173 = por %p171, %p172
      %p174 = scmp.ne.s32.totalorder %s166, %s169
      %p175 = scmp.eq.s32.totalorder %s18, 0
      %p176 = por %p174, %p175
      %p177 = scmp.ne.s32.totalorder %s166, %s169
      %p178 = scmp.eq.s32.totalorder %s23, 3
      %p179 = por %p177, %p178
      %p180 = scmp.ne.s32.totalorder %s169, %s170
      %p181 = scmp.eq.s32.totalorder %s23, 0
      %p182 = por %p180, %p181
      %p183 = scmp.ne.s32.totalorder %s169, %s170
      %p184 = scmp.eq.s32.totalorder %s24, 3
      %p185 = por %p183, %p184
      %p187 = scmp.ne.s32.totalorder %s170, %s186
      %p188 = scmp.eq.s32.totalorder %s24, 0
      %p189 = por %p187, %p188
      %p190 = scmp.le.s32.totalorder 1, %s18
      %p191 = scmp.lt.s32.totalorder %s18, 5
      %p192 = pnand %p190, %p191
      %p193 = pneg %p192
      // Predicated region
      $region9: #{tpu_custom_call.1} parent=5 // pred_check
        _
      $region10: #{tpu_custom_call.1} parent=5 // pred_check_branch
        %195 = sbr.rel (%p192) target = $region12
      $region11: #{tpu_custom_call.1} parent=5 // pred_region
        %s196 = ssub.s32 %s18, 1
        // Predicated region
        $region13: #{tpu_custom_call.1} parent=11 // pred_check
          %p197 = pneg %p133
        $region14: #{tpu_custom_call.1} parent=11 // pred_check_branch
          %199 = sbr.rel (%p197) target = $region16
        $region15: #{tpu_custom_call.1} parent=11 // pred_region
          %201 = vsyncadd [#allocation6], 0
          %s202 = sshll.u32 %s3, 4
          %s203 = int_to_ptr.hbm [resolvable:$true] %s202
          %s204 = sshll.u32 [#allocation5], 4
          %s205 = int_to_ptr.vmem [resolvable:$true] %s204
          %210 = dma.hbm_to_vmem [thread:$0]  %s203, 2048, %s205, [#allocation6], 128, 128, 8
        $region16: #{tpu_custom_call.1} parent=11 // pred_fallthru
          _
        // Predicated region
        $region17: #{tpu_custom_call.1} parent=11 // pred_check
          %p211 = pneg %p154
        $region18: #{tpu_custom_call.1} parent=11 // pred_check_branch
          %213 = sbr.rel (%p211) target = $region20
        $region19: #{tpu_custom_call.1} parent=11 // pred_region
          _
        $region20: #{tpu_custom_call.1} parent=11 // pred_fallthru
          _
      $region12: #{tpu_custom_call.1} parent=5 // pred_fallthru
        _
      %p214 = scmp.lt.s32.totalorder %s18, 4
      // Predicated region
      $region21: #{tpu_custom_call.1} parent=5 // pred_check
        %p215 = pneg %p214
      $region22: #{tpu_custom_call.1} parent=5 // pred_check_branch
        %217 = sbr.rel (%p215) target = $region24
      $region23: #{tpu_custom_call.1} parent=5 // pred_region
        // Predicated region
        $region25: #{tpu_custom_call.1} parent=23 // pred_check
          %p218 = pneg %p50
        $region26: #{tpu_custom_call.1} parent=23 // pred_check_branch
          %220 = sbr.rel (%p218) target = $region28
        $region27: #{tpu_custom_call.1} parent=23 // pred_region
          %s221 = sand.u32 %s40, 1
          %s222 = scalar_lea.sflag [#allocation3], %s221
          %s223 = sand.u32 %s40, 1
          %s224 = smul.addr %s223, 128
          %s225 = scalar_lea.vmem [#allocation2], %s224
          %227 = vsyncadd %s222, 0
          %s228 = smul.addr %s25, 32
          %s229 = smul.addr %s228, 4
          %s230 = scalar_lea.hbm %s0, %s229
          %s231 = sshll.u32 %s230, 4
          %s232 = int_to_ptr.hbm [resolvable:$true] %s231
          %s233 = sshll.u32 %s225, 4
          %s234 = int_to_ptr.vmem [resolvable:$true] %s233
          %239 = dma.hbm_to_vmem [thread:$0]  %s232, 2048, %s234, %s222, 64, 64, 4
        $region28: #{tpu_custom_call.1} parent=23 // pred_fallthru
          _
        // Predicated region
        $region29: #{tpu_custom_call.1} parent=23 // pred_check
          %p240 = pneg %p78
        $region30: #{tpu_custom_call.1} parent=23 // pred_check_branch
          %242 = sbr.rel (%p240) target = $region32
        $region31: #{tpu_custom_call.1} parent=23 // pred_region
          %s243 = smul.u32 16, %s26
          %p244 = scmp.lt.s32.totalorder %s25, 1
          %s245 = scalar_select %p244, %s25, 1
          %p246 = scmp.lt.s32.totalorder %s243, 31
          %s247 = scalar_select %p246, %s243, 31
          %s248 = smul.addr %s245, 32
          %s249 = sadd.s32 %s247, %s248
          %s250 = smul.addr %s249, 8
          %s251 = scalar_lea.vmem %s1, %s250
          %s252 = smul.u32 16, %s26
        $region32: #{tpu_custom_call.1} parent=23 // pred_fallthru
          _
        // Predicated region
        $region33: #{tpu_custom_call.1} parent=23 // pred_check
          %p253 = pneg %p106
        $region34: #{tpu_custom_call.1} parent=23 // pred_check_branch
          %255 = sbr.rel (%p253) target = $region36
        $region35: #{tpu_custom_call.1} parent=23 // pred_region
          %s256 = smul.u32 16, %s26
          %p257 = scmp.lt.s32.totalorder %s25, 1
          %s258 = scalar_select %p257, %s25, 1
          %p259 = scmp.lt.s32.totalorder %s256, 31
          %s260 = scalar_select %p259, %s256, 31
          %s261 = smul.addr %s258, 32
          %s262 = sadd.s32 %s260, %s261
          %s263 = smul.addr %s262, 8
          %s264 = scalar_lea.vmem %s2, %s263
          %s265 = smul.u32 16, %s26
        $region36: #{tpu_custom_call.1} parent=23 // pred_fallthru
          _
      $region24: #{tpu_custom_call.1} parent=5 // pred_fallthru
        _
      %p266 = scmp.le.s32.totalorder 1, %s18
      %p267 = scmp.lt.s32.totalorder %s18, 5
      %p268 = pnand %p266, %p267
      %p269 = pneg %p268
      // Predicated region
      $region37: #{tpu_custom_call.1} parent=5 // pred_check
        _
      $region38: #{tpu_custom_call.1} parent=5 // pred_check_branch
        %271 = sbr.rel (%p268) target = $region40
      $region39: #{tpu_custom_call.1} parent=5 // pred_region
        %s272 = ssub.s32 %s18, 1
        %s273 = sand.u32 %s43, 1
        %s274 = scalar_lea.sflag [#allocation3], %s273
        %s275 = sand.u32 %s43, 1
        %s276 = smul.addr %s275, 128
        %s277 = scalar_lea.vmem [#allocation2], %s276
        // Predicated region
        $region41: #{tpu_custom_call.1} parent=39 // pred_check
          %p278 = pneg %p56
        $region42: #{tpu_custom_call.1} parent=39 // pred_check_branch
          %280 = sbr.rel (%p278) target = $region44
        $region43: #{tpu_custom_call.1} parent=39 // pred_region
          %282 = dma.done %s274, 2048
        $region44: #{tpu_custom_call.1} parent=39 // pred_fallthru
          _
        // Predicated region
        $region45: #{tpu_custom_call.1} parent=39 // pred_check
          %p283 = pneg %p133
        $region46: #{tpu_custom_call.1} parent=39 // pred_check_branch
          %285 = sbr.rel (%p283) target = $region48
        $region47: #{tpu_custom_call.1} parent=39 // pred_region
          %287 = dma.done [#allocation6], 2048
        $region48: #{tpu_custom_call.1} parent=39 // pred_fallthru
          _
        %s288 = sand.u32 %s43, 1
        %s289 = scalar_lea.sflag [#allocation3], %s288
        %s290 = sand.u32 %s43, 1
        %s291 = smul.addr %s290, 128
        %s292 = scalar_lea.vmem [#allocation2], %s291
        %p293 = pneg %p56
        %p294 = pneg %p53
        %s295 = smul.u32 16, %s28
        %p296 = scmp.lt.s32.totalorder %s27, 1
        %s297 = scalar_select %p296, %s27, 1
        %p298 = scmp.lt.s32.totalorder %s295, 31
        %s299 = scalar_select %p298, %s295, 31
        %s300 = smul.addr %s297, 32
        %s301 = sadd.s32 %s299, %s300
        %s302 = smul.addr %s301, 8
        %s303 = scalar_lea.vmem %s1, %s302
        %p304 = pneg %p84
        %p305 = pneg %p81
        %s306 = smul.u32 16, %s28
        %p307 = scmp.lt.s32.totalorder %s27, 1
        %s308 = scalar_select %p307, %s27, 1
        %p309 = scmp.lt.s32.totalorder %s306, 31
        %s310 = scalar_select %p309, %s306, 31
        %s311 = smul.addr %s308, 32
        %s312 = sadd.s32 %s310, %s311
        %s313 = smul.addr %s312, 8
        %s314 = scalar_lea.vmem %s2, %s313
        %p315 = pneg %p112
        %p316 = pneg %p109
        %p317 = pneg %p133
        %p318 = pneg %p130
        %p319 = pneg %p154
        %p320 = pneg %p151
        %p321 = pneg %p182
        %p322 = pneg %p179
        %s323 = sand.u32 %s169, 1
        %s324 = scalar_lea.sflag [#allocation4], %s323
        %s325 = sand.u32 %s169, 1
        %s326 = smul.addr %s325, 128
        %s327 = scalar_lea.vmem [#allocation7], %s326
        %s328 = smul.u32 16, %s28
        %p329 = scmp.lt.s32.totalorder %s27, 1
        %s330 = scalar_select %p329, %s27, 1
        %p331 = scmp.lt.s32.totalorder %s328, 31
        %s332 = scalar_select %p331, %s328, 31
        %s333 = smul.addr %s330, 32
        %s334 = sadd.s32 %s332, %s333
        %s335 = smul.addr %s334, 8
        %s336 = scalar_lea.vmem %s1, %s335
        %s337 = smul.u32 16, %s28
        %s338 = smul.u32 16, %s28
        %p339 = scmp.lt.s32.totalorder %s27, 1
        %s340 = scalar_select %p339, %s27, 1
        %p341 = scmp.lt.s32.totalorder %s338, 31
        %s342 = scalar_select %p341, %s338, 31
        %s343 = smul.addr %s340, 32
        %s344 = sadd.s32 %s342, %s343
        %s345 = smul.addr %s344, 8
        %s346 = scalar_lea.vmem %s2, %s345
        %s347 = smul.u32 16, %s28
        %s348 = smul.u32 16, %s28
        %v349 = vld [vmem:[%s346] sm:$0xff]
        %v350 = vld [vmem:[%s346 + $0x8] sm:$0xff]
        %v351 = vld [vmem:[%s346 + $0x10] sm:$0xff]
        %v352 = vld [vmem:[%s346 + $0x18] sm:$0xff]
        %v353 = vld [vmem:[%s346 + $0x20] sm:$0xff]
        %v354 = vld [vmem:[%s346 + $0x28] sm:$0xff]
        %v355 = vld [vmem:[%s346 + $0x30] sm:$0xff]
        %v356 = vld [vmem:[%s346 + $0x38] sm:$0xff]
        %v357 = vld [vmem:[%s346 + $0x40] sm:$0xff]
        %v358 = vld [vmem:[%s346 + $0x48] sm:$0xff]
        %v359 = vld [vmem:[%s346 + $0x50] sm:$0xff]
        %v360 = vld [vmem:[%s346 + $0x58] sm:$0xff]
        %v361 = vld [vmem:[%s346 + $0x60] sm:$0xff]
        %v362 = vld [vmem:[%s346 + $0x68] sm:$0xff]
        %v363 = vld [vmem:[%s346 + $0x70] sm:$0xff]
        %v364 = vld [vmem:[%s346 + $0x78] sm:$0xff]
        %s365 = smul.u32 %s28, 128
        %v366 = vlaneseq
        %v367 = vshrl.u32 %v366, 7
        %v368 = vadd.s32 %v367, 8
        %v369 = vadd.s32 %v367, 16
        %v370 = vadd.s32 %v367, 24
        %v371 = vadd.s32 %v367, 32
        %v372 = vadd.s32 %v367, 40
        %v373 = vadd.s32 %v367, 48
        %v374 = vadd.s32 %v367, 56
        %v375 = vadd.s32 %v367, 64
        %v376 = vadd.s32 %v367, 72
        %v377 = vadd.s32 %v367, 80
        %v378 = vadd.s32 %v367, 88
        %v379 = vadd.s32 %v367, 96
        %v380 = vadd.s32 %v367, 104
        %v381 = vadd.s32 %v367, 112
        %v382 = vadd.s32 %v367, 120
        %v383 = vstv %s365
        %v384 = vadd.s32 %v383, %v367
        %v385 = vadd.s32 %v383, %v368
        %v386 = vadd.s32 %v383, %v369
        %v387 = vadd.s32 %v383, %v370
        %v388 = vadd.s32 %v383, %v371
        %v389 = vadd.s32 %v383, %v372
        %v390 = vadd.s32 %v383, %v373
        %v391 = vadd.s32 %v383, %v374
        %v392 = vadd.s32 %v383, %v375
        %v393 = vadd.s32 %v383, %v376
        %v394 = vadd.s32 %v383, %v377
        %v395 = vadd.s32 %v383, %v378
        %v396 = vadd.s32 %v383, %v379
        %v397 = vadd.s32 %v383, %v380
        %v398 = vadd.s32 %v383, %v381
        %v399 = vadd.s32 %v383, %v382
        %v400 = vlaneseq
        %v401 = vand.u32 %v400, 127
        %402 = vset.pattern.permute.xlu0 0
        %403 = vperm.xlu0 %402, %v349
        %v404 = vpop.permute.xlu0 %403
        %405 = vset.pattern.permute.xlu0 0
        %406 = vperm.xlu0 %405, %v350
        %v407 = vpop.permute.xlu0 %406
        %408 = vset.pattern.permute.xlu0 0
        %409 = vperm.xlu0 %408, %v351
        %v410 = vpop.permute.xlu0 %409
        %411 = vset.pattern.permute.xlu0 0
        %412 = vperm.xlu0 %411, %v352
        %v413 = vpop.permute.xlu0 %412
        %414 = vset.pattern.permute.xlu0 0
        %415 = vperm.xlu0 %414, %v353
        %v416 = vpop.permute.xlu0 %415
        %417 = vset.pattern.permute.xlu0 0
        %418 = vperm.xlu0 %417, %v354
        %v419 = vpop.permute.xlu0 %418
        %420 = vset.pattern.permute.xlu0 0
        %421 = vperm.xlu0 %420, %v355
        %v422 = vpop.permute.xlu0 %421
        %423 = vset.pattern.permute.xlu0 0
        %424 = vperm.xlu0 %423, %v356
        %v425 = vpop.permute.xlu0 %424
        %426 = vset.pattern.permute.xlu0 0
        %427 = vperm.xlu0 %426, %v357
        %v428 = vpop.permute.xlu0 %427
        %429 = vset.pattern.permute.xlu0 0
        %430 = vperm.xlu0 %429, %v358
        %v431 = vpop.permute.xlu0 %430
        %432 = vset.pattern.permute.xlu0 0
        %433 = vperm.xlu0 %432, %v359
        %v434 = vpop.permute.xlu0 %433
        %435 = vset.pattern.permute.xlu0 0
        %436 = vperm.xlu0 %435, %v360
        %v437 = vpop.permute.xlu0 %436
        %438 = vset.pattern.permute.xlu0 0
        %439 = vperm.xlu0 %438, %v361
        %v440 = vpop.permute.xlu0 %439
        %441 = vset.pattern.permute.xlu0 0
        %442 = vperm.xlu0 %441, %v362
        %v443 = vpop.permute.xlu0 %442
        %444 = vset.pattern.permute.xlu0 0
        %445 = vperm.xlu0 %444, %v363
        %v446 = vpop.permute.xlu0 %445
        %447 = vset.pattern.permute.xlu0 0
        %448 = vperm.xlu0 %447, %v364
        %v449 = vpop.permute.xlu0 %448
        %vm450 = vcmp.eq.s32.totalorder %v401, %v404
        %vm451 = vcmp.eq.s32.totalorder %v401, %v407
        %vm452 = vcmp.eq.s32.totalorder %v401, %v410
        %vm453 = vcmp.eq.s32.totalorder %v401, %v413
        %vm454 = vcmp.eq.s32.totalorder %v401, %v416
        %vm455 = vcmp.eq.s32.totalorder %v401, %v419
        %vm456 = vcmp.eq.s32.totalorder %v401, %v422
        %vm457 = vcmp.eq.s32.totalorder %v401, %v425
        %vm458 = vcmp.eq.s32.totalorder %v401, %v428
        %vm459 = vcmp.eq.s32.totalorder %v401, %v431
        %vm460 = vcmp.eq.s32.totalorder %v401, %v434
        %vm461 = vcmp.eq.s32.totalorder %v401, %v437
        %vm462 = vcmp.eq.s32.totalorder %v401, %v440
        %vm463 = vcmp.eq.s32.totalorder %v401, %v443
        %vm464 = vcmp.eq.s32.totalorder %v401, %v446
        %vm465 = vcmp.eq.s32.totalorder %v401, %v449
        %v466 = vsel %vm450, 1, 0
        %v467 = vsel %vm451, 1, 0
        %v468 = vsel %vm452, 1, 0
        %v469 = vsel %vm453, 1, 0
        %v470 = vsel %vm454, 1, 0
        %v471 = vsel %vm455, 1, 0
        %v472 = vsel %vm456, 1, 0
        %v473 = vsel %vm457, 1, 0
        %v474 = vsel %vm458, 1, 0
        %v475 = vsel %vm459, 1, 0
        %v476 = vsel %vm460, 1, 0
        %v477 = vsel %vm461, 1, 0
        %v478 = vsel %vm462, 1, 0
        %v479 = vsel %vm463, 1, 0
        %v480 = vsel %vm464, 1, 0
        %v481 = vsel %vm465, 1, 0
        %v482 = vcvt.s32.f32 %v466
        %v483 = vcvt.s32.f32 %v467
        %v484 = vcvt.s32.f32 %v468
        %v485 = vcvt.s32.f32 %v469
        %v486 = vcvt.s32.f32 %v470
        %v487 = vcvt.s32.f32 %v471
        %v488 = vcvt.s32.f32 %v472
        %v489 = vcvt.s32.f32 %v473
        %v490 = vcvt.s32.f32 %v474
        %v491 = vcvt.s32.f32 %v475
        %v492 = vcvt.s32.f32 %v476
        %v493 = vcvt.s32.f32 %v477
        %v494 = vcvt.s32.f32 %v478
        %v495 = vcvt.s32.f32 %v479
        %v496 = vcvt.s32.f32 %v480
        %v497 = vcvt.s32.f32 %v481
        %v498 = vadd.f32 %v482, 0.0
        %v499 = vadd.f32 %v483, 0.0
        %v500 = vadd.f32 %v484, 0.0
        %v501 = vadd.f32 %v485, 0.0
        %v502 = vadd.f32 %v486, 0.0
        %v503 = vadd.f32 %v487, 0.0
        %v504 = vadd.f32 %v488, 0.0
        %v505 = vadd.f32 %v489, 0.0
        %v506 = vadd.f32 %v490, 0.0
        %v507 = vadd.f32 %v491, 0.0
        %v508 = vadd.f32 %v492, 0.0
        %v509 = vadd.f32 %v493, 0.0
        %v510 = vadd.f32 %v494, 0.0
        %v511 = vadd.f32 %v495, 0.0
        %v512 = vadd.f32 %v496, 0.0
        %v513 = vadd.f32 %v497, 0.0
        %514 = vset.pattern.permute.xlu0 1
        %515 = vperm.xlu0 %514, %v349
        %v516 = vpop.permute.xlu0 %515
        %517 = vset.pattern.permute.xlu0 1
        %518 = vperm.xlu0 %517, %v350
        %v519 = vpop.permute.xlu0 %518
        %520 = vset.pattern.permute.xlu0 1
        %521 = vperm.xlu0 %520, %v351
        %v522 = vpop.permute.xlu0 %521
        %523 = vset.pattern.permute.xlu0 1
        %524 = vperm.xlu0 %523, %v352
        %v525 = vpop.permute.xlu0 %524
        %526 = vset.pattern.permute.xlu0 1
        %527 = vperm.xlu0 %526, %v353
        %v528 = vpop.permute.xlu0 %527
        %529 = vset.pattern.permute.xlu0 1
        %530 = vperm.xlu0 %529, %v354
        %v531 = vpop.permute.xlu0 %530
        %532 = vset.pattern.permute.xlu0 1
        %533 = vperm.xlu0 %532, %v355
        %v534 = vpop.permute.xlu0 %533
        %535 = vset.pattern.permute.xlu0 1
        %536 = vperm.xlu0 %535, %v356
        %v537 = vpop.permute.xlu0 %536
        %538 = vset.pattern.permute.xlu0 1
        %539 = vperm.xlu0 %538, %v357
        %v540 = vpop.permute.xlu0 %539
        %541 = vset.pattern.permute.xlu0 1
        %542 = vperm.xlu0 %541, %v358
        %v543 = vpop.permute.xlu0 %542
        %544 = vset.pattern.permute.xlu0 1
        %545 = vperm.xlu0 %544, %v359
        %v546 = vpop.permute.xlu0 %545
        %547 = vset.pattern.permute.xlu0 1
        %548 = vperm.xlu0 %547, %v360
        %v549 = vpop.permute.xlu0 %548
        %550 = vset.pattern.permute.xlu0 1
        %551 = vperm.xlu0 %550, %v361
        %v552 = vpop.permute.xlu0 %551
        %553 = vset.pattern.permute.xlu0 1
        %554 = vperm.xlu0 %553, %v362
        %v555 = vpop.permute.xlu0 %554
        %556 = vset.pattern.permute.xlu0 1
        %557 = vperm.xlu0 %556, %v363
        %v558 = vpop.permute.xlu0 %557
        %559 = vset.pattern.permute.xlu0 1
        %560 = vperm.xlu0 %559, %v364
        %v561 = vpop.permute.xlu0 %560
        %vm562 = vcmp.eq.s32.totalorder %v401, %v516
        %vm563 = vcmp.eq.s32.totalorder %v401, %v519
        %vm564 = vcmp.eq.s32.totalorder %v401, %v522
        %vm565 = vcmp.eq.s32.totalorder %v401, %v525
        %vm566 = vcmp.eq.s32.totalorder %v401, %v528
        %vm567 = vcmp.eq.s32.totalorder %v401, %v531
        %vm568 = vcmp.eq.s32.totalorder %v401, %v534
        %vm569 = vcmp.eq.s32.totalorder %v401, %v537
        %vm570 = vcmp.eq.s32.totalorder %v401, %v540
        %vm571 = vcmp.eq.s32.totalorder %v401, %v543
        %vm572 = vcmp.eq.s32.totalorder %v401, %v546
        %vm573 = vcmp.eq.s32.totalorder %v401, %v549
        %vm574 = vcmp.eq.s32.totalorder %v401, %v552
        %vm575 = vcmp.eq.s32.totalorder %v401, %v555
        %vm576 = vcmp.eq.s32.totalorder %v401, %v558
        %vm577 = vcmp.eq.s32.totalorder %v401, %v561
        %v578 = vsel %vm562, 1, 0
        %v579 = vsel %vm563, 1, 0
        %v580 = vsel %vm564, 1, 0
        %v581 = vsel %vm565, 1, 0
        %v582 = vsel %vm566, 1, 0
        %v583 = vsel %vm567, 1, 0
        %v584 = vsel %vm568, 1, 0
        %v585 = vsel %vm569, 1, 0
        %v586 = vsel %vm570, 1, 0
        %v587 = vsel %vm571, 1, 0
        %v588 = vsel %vm572, 1, 0
        %v589 = vsel %vm573, 1, 0
        %v590 = vsel %vm574, 1, 0
        %v591 = vsel %vm575, 1, 0
        %v592 = vsel %vm576, 1, 0
        %v593 = vsel %vm577, 1, 0
        %v594 = vcvt.s32.f32 %v578
        %v595 = vcvt.s32.f32 %v579
        %v596 = vcvt.s32.f32 %v580
        %v597 = vcvt.s32.f32 %v581
        %v598 = vcvt.s32.f32 %v582
        %v599 = vcvt.s32.f32 %v583
        %v600 = vcvt.s32.f32 %v584
        %v601 = vcvt.s32.f32 %v585
        %v602 = vcvt.s32.f32 %v586
        %v603 = vcvt.s32.f32 %v587
        %v604 = vcvt.s32.f32 %v588
        %v605 = vcvt.s32.f32 %v589
        %v606 = vcvt.s32.f32 %v590
        %v607 = vcvt.s32.f32 %v591
        %v608 = vcvt.s32.f32 %v592
        %v609 = vcvt.s32.f32 %v593
        %v610 = vadd.f32 %v498, %v594
        %v611 = vadd.f32 %v499, %v595
        %v612 = vadd.f32 %v500, %v596
        %v613 = vadd.f32 %v501, %v597
        %v614 = vadd.f32 %v502, %v598
        %v615 = vadd.f32 %v503, %v599
        %v616 = vadd.f32 %v504, %v600
        %v617 = vadd.f32 %v505, %v601
        %v618 = vadd.f32 %v506, %v602
        %v619 = vadd.f32 %v507, %v603
        %v620 = vadd.f32 %v508, %v604
        %v621 = vadd.f32 %v509, %v605
        %v622 = vadd.f32 %v510, %v606
        %v623 = vadd.f32 %v511, %v607
        %v624 = vadd.f32 %v512, %v608
        %v625 = vadd.f32 %v513, %v609
        %626 = vset.pattern.permute.xlu0 2
        %627 = vperm.xlu0 %626, %v349
        %v628 = vpop.permute.xlu0 %627
        %629 = vset.pattern.permute.xlu0 2
        %630 = vperm.xlu0 %629, %v350
        %v631 = vpop.permute.xlu0 %630
        %632 = vset.pattern.permute.xlu0 2
        %633 = vperm.xlu0 %632, %v351
        %v634 = vpop.permute.xlu0 %633
        %635 = vset.pattern.permute.xlu0 2
        %636 = vperm.xlu0 %635, %v352
        %v637 = vpop.permute.xlu0 %636
        %638 = vset.pattern.permute.xlu0 2
        %639 = vperm.xlu0 %638, %v353
        %v640 = vpop.permute.xlu0 %639
        %641 = vset.pattern.permute.xlu0 2
        %642 = vperm.xlu0 %641, %v354
        %v643 = vpop.permute.xlu0 %642
        %644 = vset.pattern.permute.xlu0 2
        %645 = vperm.xlu0 %644, %v355
        %v646 = vpop.permute.xlu0 %645
        %647 = vset.pattern.permute.xlu0 2
        %648 = vperm.xlu0 %647, %v356
        %v649 = vpop.permute.xlu0 %648
        %650 = vset.pattern.permute.xlu0 2
        %651 = vperm.xlu0 %650, %v357
        %v652 = vpop.permute.xlu0 %651
        %653 = vset.pattern.permute.xlu0 2
        %654 = vperm.xlu0 %653, %v358
        %v655 = vpop.permute.xlu0 %654
        %656 = vset.pattern.permute.xlu0 2
        %657 = vperm.xlu0 %656, %v359
        %v658 = vpop.permute.xlu0 %657
        %659 = vset.pattern.permute.xlu0 2
        %660 = vperm.xlu0 %659, %v360
        %v661 = vpop.permute.xlu0 %660
        %662 = vset.pattern.permute.xlu0 2
        %663 = vperm.xlu0 %662, %v361
        %v664 = vpop.permute.xlu0 %663
        %665 = vset.pattern.permute.xlu0 2
        %666 = vperm.xlu0 %665, %v362
        %v667 = vpop.permute.xlu0 %666
        %668 = vset.pattern.permute.xlu0 2
        %669 = vperm.xlu0 %668, %v363
        %v670 = vpop.permute.xlu0 %669
        %671 = vset.pattern.permute.xlu0 2
        %672 = vperm.xlu0 %671, %v364
        %v673 = vpop.permute.xlu0 %672
        %vm674 = vcmp.eq.s32.totalorder %v401, %v628
        %vm675 = vcmp.eq.s32.totalorder %v401, %v631
        %vm676 = vcmp.eq.s32.totalorder %v401, %v634
        %vm677 = vcmp.eq.s32.totalorder %v401, %v637
        %vm678 = vcmp.eq.s32.totalorder %v401, %v640
        %vm679 = vcmp.eq.s32.totalorder %v401, %v643
        %vm680 = vcmp.eq.s32.totalorder %v401, %v646
        %vm681 = vcmp.eq.s32.totalorder %v401, %v649
        %vm682 = vcmp.eq.s32.totalorder %v401, %v652
        %vm683 = vcmp.eq.s32.totalorder %v401, %v655
        %vm684 = vcmp.eq.s32.totalorder %v401, %v658
        %vm685 = vcmp.eq.s32.totalorder %v401, %v661
        %vm686 = vcmp.eq.s32.totalorder %v401, %v664
        %vm687 = vcmp.eq.s32.totalorder %v401, %v667
        %vm688 = vcmp.eq.s32.totalorder %v401, %v670
        %vm689 = vcmp.eq.s32.totalorder %v401, %v673
        %v690 = vsel %vm674, 1, 0
        %v691 = vsel %vm675, 1, 0
        %v692 = vsel %vm676, 1, 0
        %v693 = vsel %vm677, 1, 0
        %v694 = vsel %vm678, 1, 0
        %v695 = vsel %vm679, 1, 0
        %v696 = vsel %vm680, 1, 0
        %v697 = vsel %vm681, 1, 0
        %v698 = vsel %vm682, 1, 0
        %v699 = vsel %vm683, 1, 0
        %v700 = vsel %vm684, 1, 0
        %v701 = vsel %vm685, 1, 0
        %v702 = vsel %vm686, 1, 0
        %v703 = vsel %vm687, 1, 0
        %v704 = vsel %vm688, 1, 0
        %v705 = vsel %vm689, 1, 0
        %v706 = vcvt.s32.f32 %v690
        %v707 = vcvt.s32.f32 %v691
        %v708 = vcvt.s32.f32 %v692
        %v709 = vcvt.s32.f32 %v693
        %v710 = vcvt.s32.f32 %v694
        %v711 = vcvt.s32.f32 %v695
        %v712 = vcvt.s32.f32 %v696
        %v713 = vcvt.s32.f32 %v697
        %v714 = vcvt.s32.f32 %v698
        %v715 = vcvt.s32.f32 %v699
        %v716 = vcvt.s32.f32 %v700
        %v717 = vcvt.s32.f32 %v701
        %v718 = vcvt.s32.f32 %v702
        %v719 = vcvt.s32.f32 %v703
        %v720 = vcvt.s32.f32 %v704
        %v721 = vcvt.s32.f32 %v705
        %v722 = vadd.f32 %v610, %v706
        %v723 = vadd.f32 %v611, %v707
        %v724 = vadd.f32 %v612, %v708
        %v725 = vadd.f32 %v613, %v709
        %v726 = vadd.f32 %v614, %v710
        %v727 = vadd.f32 %v615, %v711
        %v728 = vadd.f32 %v616, %v712
        %v729 = vadd.f32 %v617, %v713
        %v730 = vadd.f32 %v618, %v714
        %v731 = vadd.f32 %v619, %v715
        %v732 = vadd.f32 %v620, %v716
        %v733 = vadd.f32 %v621, %v717
        %v734 = vadd.f32 %v622, %v718
        %v735 = vadd.f32 %v623, %v719
        %v736 = vadd.f32 %v624, %v720
        %v737 = vadd.f32 %v625, %v721
        %738 = vset.pattern.permute.xlu0 3
        %739 = vperm.xlu0 %738, %v349
        %v740 = vpop.permute.xlu0 %739
        %741 = vset.pattern.permute.xlu0 3
        %742 = vperm.xlu0 %741, %v350
        %v743 = vpop.permute.xlu0 %742
        %744 = vset.pattern.permute.xlu0 3
        %745 = vperm.xlu0 %744, %v351
        %v746 = vpop.permute.xlu0 %745
        %747 = vset.pattern.permute.xlu0 3
        %748 = vperm.xlu0 %747, %v352
        %v749 = vpop.permute.xlu0 %748
        %750 = vset.pattern.permute.xlu0 3
        %751 = vperm.xlu0 %750, %v353
        %v752 = vpop.permute.xlu0 %751
        %753 = vset.pattern.permute.xlu0 3
        %754 = vperm.xlu0 %753, %v354
        %v755 = vpop.permute.xlu0 %754
        %756 = vset.pattern.permute.xlu0 3
        %757 = vperm.xlu0 %756, %v355
        %v758 = vpop.permute.xlu0 %757
        %759 = vset.pattern.permute.xlu0 3
        %760 = vperm.xlu0 %759, %v356
        %v761 = vpop.permute.xlu0 %760
        %762 = vset.pattern.permute.xlu0 3
        %763 = vperm.xlu0 %762, %v357
        %v764 = vpop.permute.xlu0 %763
        %765 = vset.pattern.permute.xlu0 3
        %766 = vperm.xlu0 %765, %v358
        %v767 = vpop.permute.xlu0 %766
        %768 = vset.pattern.permute.xlu0 3
        %769 = vperm.xlu0 %768, %v359
        %v770 = vpop.permute.xlu0 %769
        %771 = vset.pattern.permute.xlu0 3
        %772 = vperm.xlu0 %771, %v360
        %v773 = vpop.permute.xlu0 %772
        %774 = vset.pattern.permute.xlu0 3
        %775 = vperm.xlu0 %774, %v361
        %v776 = vpop.permute.xlu0 %775
        %777 = vset.pattern.permute.xlu0 3
        %778 = vperm.xlu0 %777, %v362
        %v779 = vpop.permute.xlu0 %778
        %780 = vset.pattern.permute.xlu0 3
        %781 = vperm.xlu0 %780, %v363
        %v782 = vpop.permute.xlu0 %781
        %783 = vset.pattern.permute.xlu0 3
        %784 = vperm.xlu0 %783, %v364
        %v785 = vpop.permute.xlu0 %784
        %vm786 = vcmp.eq.s32.totalorder %v401, %v740
        %vm787 = vcmp.eq.s32.totalorder %v401, %v743
        %vm788 = vcmp.eq.s32.totalorder %v401, %v746
        %vm789 = vcmp.eq.s32.totalorder %v401, %v749
        %vm790 = vcmp.eq.s32.totalorder %v401, %v752
        %vm791 = vcmp.eq.s32.totalorder %v401, %v755
        %vm792 = vcmp.eq.s32.totalorder %v401, %v758
        %vm793 = vcmp.eq.s32.totalorder %v401, %v761
        %vm794 = vcmp.eq.s32.totalorder %v401, %v764
        %vm795 = vcmp.eq.s32.totalorder %v401, %v767
        %vm796 = vcmp.eq.s32.totalorder %v401, %v770
        %vm797 = vcmp.eq.s32.totalorder %v401, %v773
        %vm798 = vcmp.eq.s32.totalorder %v401, %v776
        %vm799 = vcmp.eq.s32.totalorder %v401, %v779
        %vm800 = vcmp.eq.s32.totalorder %v401, %v782
        %vm801 = vcmp.eq.s32.totalorder %v401, %v785
        %v802 = vsel %vm786, 1, 0
        %v803 = vsel %vm787, 1, 0
        %v804 = vsel %vm788, 1, 0
        %v805 = vsel %vm789, 1, 0
        %v806 = vsel %vm790, 1, 0
        %v807 = vsel %vm791, 1, 0
        %v808 = vsel %vm792, 1, 0
        %v809 = vsel %vm793, 1, 0
        %v810 = vsel %vm794, 1, 0
        %v811 = vsel %vm795, 1, 0
        %v812 = vsel %vm796, 1, 0
        %v813 = vsel %vm797, 1, 0
        %v814 = vsel %vm798, 1, 0
        %v815 = vsel %vm799, 1, 0
        %v816 = vsel %vm800, 1, 0
        %v817 = vsel %vm801, 1, 0
        %v818 = vcvt.s32.f32 %v802
        %v819 = vcvt.s32.f32 %v803
        %v820 = vcvt.s32.f32 %v804
        %v821 = vcvt.s32.f32 %v805
        %v822 = vcvt.s32.f32 %v806
        %v823 = vcvt.s32.f32 %v807
        %v824 = vcvt.s32.f32 %v808
        %v825 = vcvt.s32.f32 %v809
        %v826 = vcvt.s32.f32 %v810
        %v827 = vcvt.s32.f32 %v811
        %v828 = vcvt.s32.f32 %v812
        %v829 = vcvt.s32.f32 %v813
        %v830 = vcvt.s32.f32 %v814
        %v831 = vcvt.s32.f32 %v815
        %v832 = vcvt.s32.f32 %v816
        %v833 = vcvt.s32.f32 %v817
        %v834 = vadd.f32 %v722, %v818
        %v835 = vadd.f32 %v723, %v819
        %v836 = vadd.f32 %v724, %v820
        %v837 = vadd.f32 %v725, %v821
        %v838 = vadd.f32 %v726, %v822
        %v839 = vadd.f32 %v727, %v823
        %v840 = vadd.f32 %v728, %v824
        %v841 = vadd.f32 %v729, %v825
        %v842 = vadd.f32 %v730, %v826
        %v843 = vadd.f32 %v731, %v827
        %v844 = vadd.f32 %v732, %v828
        %v845 = vadd.f32 %v733, %v829
        %v846 = vadd.f32 %v734, %v830
        %v847 = vadd.f32 %v735, %v831
        %v848 = vadd.f32 %v736, %v832
        %v849 = vadd.f32 %v737, %v833
        %850 = vset.pattern.permute.xlu0 4
        %851 = vperm.xlu0 %850, %v349
        %v852 = vpop.permute.xlu0 %851
        %853 = vset.pattern.permute.xlu0 4
        %854 = vperm.xlu0 %853, %v350
        %v855 = vpop.permute.xlu0 %854
        %856 = vset.pattern.permute.xlu0 4
        %857 = vperm.xlu0 %856, %v351
        %v858 = vpop.permute.xlu0 %857
        %859 = vset.pattern.permute.xlu0 4
        %860 = vperm.xlu0 %859, %v352
        %v861 = vpop.permute.xlu0 %860
        %862 = vset.pattern.permute.xlu0 4
        %863 = vperm.xlu0 %862, %v353
        %v864 = vpop.permute.xlu0 %863
        %865 = vset.pattern.permute.xlu0 4
        %866 = vperm.xlu0 %865, %v354
        %v867 = vpop.permute.xlu0 %866
        %868 = vset.pattern.permute.xlu0 4
        %869 = vperm.xlu0 %868, %v355
        %v870 = vpop.permute.xlu0 %869
        %871 = vset.pattern.permute.xlu0 4
        %872 = vperm.xlu0 %871, %v356
        %v873 = vpop.permute.xlu0 %872
        %874 = vset.pattern.permute.xlu0 4
        %875 = vperm.xlu0 %874, %v357
        %v876 = vpop.permute.xlu0 %875
        %877 = vset.pattern.permute.xlu0 4
        %878 = vperm.xlu0 %877, %v358
        %v879 = vpop.permute.xlu0 %878
        %880 = vset.pattern.permute.xlu0 4
        %881 = vperm.xlu0 %880, %v359
        %v882 = vpop.permute.xlu0 %881
        %883 = vset.pattern.permute.xlu0 4
        %884 = vperm.xlu0 %883, %v360
        %v885 = vpop.permute.xlu0 %884
        %886 = vset.pattern.permute.xlu0 4
        %887 = vperm.xlu0 %886, %v361
        %v888 = vpop.permute.xlu0 %887
        %889 = vset.pattern.permute.xlu0 4
        %890 = vperm.xlu0 %889, %v362
        %v891 = vpop.permute.xlu0 %890
        %892 = vset.pattern.permute.xlu0 4
        %893 = vperm.xlu0 %892, %v363
        %v894 = vpop.permute.xlu0 %893
        %895 = vset.pattern.permute.xlu0 4
        %896 = vperm.xlu0 %895, %v364
        %v897 = vpop.permute.xlu0 %896
        %vm898 = vcmp.eq.s32.totalorder %v401, %v852
        %vm899 = vcmp.eq.s32.totalorder %v401, %v855
        %vm900 = vcmp.eq.s32.totalorder %v401, %v858
        %vm901 = vcmp.eq.s32.totalorder %v401, %v861
        %vm902 = vcmp.eq.s32.totalorder %v401, %v864
        %vm903 = vcmp.eq.s32.totalorder %v401, %v867
        %vm904 = vcmp.eq.s32.totalorder %v401, %v870
        %vm905 = vcmp.eq.s32.totalorder %v401, %v873
        %vm906 = vcmp.eq.s32.totalorder %v401, %v876
        %vm907 = vcmp.eq.s32.totalorder %v401, %v879
        %vm908 = vcmp.eq.s32.totalorder %v401, %v882
        %vm909 = vcmp.eq.s32.totalorder %v401, %v885
        %vm910 = vcmp.eq.s32.totalorder %v401, %v888
        %vm911 = vcmp.eq.s32.totalorder %v401, %v891
        %vm912 = vcmp.eq.s32.totalorder %v401, %v894
        %vm913 = vcmp.eq.s32.totalorder %v401, %v897
        %v914 = vsel %vm898, 1, 0
        %v915 = vsel %vm899, 1, 0
        %v916 = vsel %vm900, 1, 0
        %v917 = vsel %vm901, 1, 0
        %v918 = vsel %vm902, 1, 0
        %v919 = vsel %vm903, 1, 0
        %v920 = vsel %vm904, 1, 0
        %v921 = vsel %vm905, 1, 0
        %v922 = vsel %vm906, 1, 0
        %v923 = vsel %vm907, 1, 0
        %v924 = vsel %vm908, 1, 0
        %v925 = vsel %vm909, 1, 0
        %v926 = vsel %vm910, 1, 0
        %v927 = vsel %vm911, 1, 0
        %v928 = vsel %vm912, 1, 0
        %v929 = vsel %vm913, 1, 0
        %v930 = vcvt.s32.f32 %v914
        %v931 = vcvt.s32.f32 %v915
        %v932 = vcvt.s32.f32 %v916
        %v933 = vcvt.s32.f32 %v917
        %v934 = vcvt.s32.f32 %v918
        %v935 = vcvt.s32.f32 %v919
        %v936 = vcvt.s32.f32 %v920
        %v937 = vcvt.s32.f32 %v921
        %v938 = vcvt.s32.f32 %v922
        %v939 = vcvt.s32.f32 %v923
        %v940 = vcvt.s32.f32 %v924
        %v941 = vcvt.s32.f32 %v925
        %v942 = vcvt.s32.f32 %v926
        %v943 = vcvt.s32.f32 %v927
        %v944 = vcvt.s32.f32 %v928
        %v945 = vcvt.s32.f32 %v929
        %v946 = vadd.f32 %v834, %v930
        %v947 = vadd.f32 %v835, %v931
        %v948 = vadd.f32 %v836, %v932
        %v949 = vadd.f32 %v837, %v933
        %v950 = vadd.f32 %v838, %v934
        %v951 = vadd.f32 %v839, %v935
        %v952 = vadd.f32 %v840, %v936
        %v953 = vadd.f32 %v841, %v937
        %v954 = vadd.f32 %v842, %v938
        %v955 = vadd.f32 %v843, %v939
        %v956 = vadd.f32 %v844, %v940
        %v957 = vadd.f32 %v845, %v941
        %v958 = vadd.f32 %v846, %v942
        %v959 = vadd.f32 %v847, %v943
        %v960 = vadd.f32 %v848, %v944
        %v961 = vadd.f32 %v849, %v945
        %962 = vset.pattern.permute.xlu0 5
        %963 = vperm.xlu0 %962, %v349
        %v964 = vpop.permute.xlu0 %963
        %965 = vset.pattern.permute.xlu0 5
        %966 = vperm.xlu0 %965, %v350
        %v967 = vpop.permute.xlu0 %966
        %968 = vset.pattern.permute.xlu0 5
        %969 = vperm.xlu0 %968, %v351
        %v970 = vpop.permute.xlu0 %969
        %971 = vset.pattern.permute.xlu0 5
        %972 = vperm.xlu0 %971, %v352
        %v973 = vpop.permute.xlu0 %972
        %974 = vset.pattern.permute.xlu0 5
        %975 = vperm.xlu0 %974, %v353
        %v976 = vpop.permute.xlu0 %975
        %977 = vset.pattern.permute.xlu0 5
        %978 = vperm.xlu0 %977, %v354
        %v979 = vpop.permute.xlu0 %978
        %980 = vset.pattern.permute.xlu0 5
        %981 = vperm.xlu0 %980, %v355
        %v982 = vpop.permute.xlu0 %981
        %983 = vset.pattern.permute.xlu0 5
        %984 = vperm.xlu0 %983, %v356
        %v985 = vpop.permute.xlu0 %984
        %986 = vset.pattern.permute.xlu0 5
        %987 = vperm.xlu0 %986, %v357
        %v988 = vpop.permute.xlu0 %987
        %989 = vset.pattern.permute.xlu0 5
        %990 = vperm.xlu0 %989, %v358
        %v991 = vpop.permute.xlu0 %990
        %992 = vset.pattern.permute.xlu0 5
        %993 = vperm.xlu0 %992, %v359
        %v994 = vpop.permute.xlu0 %993
        %995 = vset.pattern.permute.xlu0 5
        %996 = vperm.xlu0 %995, %v360
        %v997 = vpop.permute.xlu0 %996
        %998 = vset.pattern.permute.xlu0 5
        %999 = vperm.xlu0 %998, %v361
        %v1000 = vpop.permute.xlu0 %999
        %1001 = vset.pattern.permute.xlu0 5
        %1002 = vperm.xlu0 %1001, %v362
        %v1003 = vpop.permute.xlu0 %1002
        %1004 = vset.pattern.permute.xlu0 5
        %1005 = vperm.xlu0 %1004, %v363
        %v1006 = vpop.permute.xlu0 %1005
        %1007 = vset.pattern.permute.xlu0 5
        %1008 = vperm.xlu0 %1007, %v364
        %v1009 = vpop.permute.xlu0 %1008
        %vm1010 = vcmp.eq.s32.totalorder %v401, %v964
        %vm1011 = vcmp.eq.s32.totalorder %v401, %v967
        %vm1012 = vcmp.eq.s32.totalorder %v401, %v970
        %vm1013 = vcmp.eq.s32.totalorder %v401, %v973
        %vm1014 = vcmp.eq.s32.totalorder %v401, %v976
        %vm1015 = vcmp.eq.s32.totalorder %v401, %v979
        %vm1016 = vcmp.eq.s32.totalorder %v401, %v982
        %vm1017 = vcmp.eq.s32.totalorder %v401, %v985
        %vm1018 = vcmp.eq.s32.totalorder %v401, %v988
        %vm1019 = vcmp.eq.s32.totalorder %v401, %v991
        %vm1020 = vcmp.eq.s32.totalorder %v401, %v994
        %vm1021 = vcmp.eq.s32.totalorder %v401, %v997
        %vm1022 = vcmp.eq.s32.totalorder %v401, %v1000
        %vm1023 = vcmp.eq.s32.totalorder %v401, %v1003
        %vm1024 = vcmp.eq.s32.totalorder %v401, %v1006
        %vm1025 = vcmp.eq.s32.totalorder %v401, %v1009
        %v1026 = vsel %vm1010, 1, 0
        %v1027 = vsel %vm1011, 1, 0
        %v1028 = vsel %vm1012, 1, 0
        %v1029 = vsel %vm1013, 1, 0
        %v1030 = vsel %vm1014, 1, 0
        %v1031 = vsel %vm1015, 1, 0
        %v1032 = vsel %vm1016, 1, 0
        %v1033 = vsel %vm1017, 1, 0
        %v1034 = vsel %vm1018, 1, 0
        %v1035 = vsel %vm1019, 1, 0
        %v1036 = vsel %vm1020, 1, 0
        %v1037 = vsel %vm1021, 1, 0
        %v1038 = vsel %vm1022, 1, 0
        %v1039 = vsel %vm1023, 1, 0
        %v1040 = vsel %vm1024, 1, 0
        %v1041 = vsel %vm1025, 1, 0
        %v1042 = vcvt.s32.f32 %v1026
        %v1043 = vcvt.s32.f32 %v1027
        %v1044 = vcvt.s32.f32 %v1028
        %v1045 = vcvt.s32.f32 %v1029
        %v1046 = vcvt.s32.f32 %v1030
        %v1047 = vcvt.s32.f32 %v1031
        %v1048 = vcvt.s32.f32 %v1032
        %v1049 = vcvt.s32.f32 %v1033
        %v1050 = vcvt.s32.f32 %v1034
        %v1051 = vcvt.s32.f32 %v1035
        %v1052 = vcvt.s32.f32 %v1036
        %v1053 = vcvt.s32.f32 %v1037
        %v1054 = vcvt.s32.f32 %v1038
        %v1055 = vcvt.s32.f32 %v1039
        %v1056 = vcvt.s32.f32 %v1040
        %v1057 = vcvt.s32.f32 %v1041
        %v1058 = vadd.f32 %v946, %v1042
        %v1059 = vadd.f32 %v947, %v1043
        %v1060 = vadd.f32 %v948, %v1044
        %v1061 = vadd.f32 %v949, %v1045
        %v1062 = vadd.f32 %v950, %v1046
        %v1063 = vadd.f32 %v951, %v1047
        %v1064 = vadd.f32 %v952, %v1048
        %v1065 = vadd.f32 %v953, %v1049
        %v1066 = vadd.f32 %v954, %v1050
        %v1067 = vadd.f32 %v955, %v1051
        %v1068 = vadd.f32 %v956, %v1052
        %v1069 = vadd.f32 %v957, %v1053
        %v1070 = vadd.f32 %v958, %v1054
        %v1071 = vadd.f32 %v959, %v1055
        %v1072 = vadd.f32 %v960, %v1056
        %v1073 = vadd.f32 %v961, %v1057
        %1074 = vset.pattern.permute.xlu0 6
        %1075 = vperm.xlu0 %1074, %v349
        %v1076 = vpop.permute.xlu0 %1075
        %1077 = vset.pattern.permute.xlu0 6
        %1078 = vperm.xlu0 %1077, %v350
        %v1079 = vpop.permute.xlu0 %1078
        %1080 = vset.pattern.permute.xlu0 6
        %1081 = vperm.xlu0 %1080, %v351
        %v1082 = vpop.permute.xlu0 %1081
        %1083 = vset.pattern.permute.xlu0 6
        %1084 = vperm.xlu0 %1083, %v352
        %v1085 = vpop.permute.xlu0 %1084
        %1086 = vset.pattern.permute.xlu0 6
        %1087 = vperm.xlu0 %1086, %v353
        %v1088 = vpop.permute.xlu0 %1087
        %1089 = vset.pattern.permute.xlu0 6
        %1090 = vperm.xlu0 %1089, %v354
        %v1091 = vpop.permute.xlu0 %1090
        %1092 = vset.pattern.permute.xlu0 6
        %1093 = vperm.xlu0 %1092, %v355
        %v1094 = vpop.permute.xlu0 %1093
        %1095 = vset.pattern.permute.xlu0 6
        %1096 = vperm.xlu0 %1095, %v356
        %v1097 = vpop.permute.xlu0 %1096
        %1098 = vset.pattern.permute.xlu0 6
        %1099 = vperm.xlu0 %1098, %v357
        %v1100 = vpop.permute.xlu0 %1099
        %1101 = vset.pattern.permute.xlu0 6
        %1102 = vperm.xlu0 %1101, %v358
        %v1103 = vpop.permute.xlu0 %1102
        %1104 = vset.pattern.permute.xlu0 6
        %1105 = vperm.xlu0 %1104, %v359
        %v1106 = vpop.permute.xlu0 %1105
        %1107 = vset.pattern.permute.xlu0 6
        %1108 = vperm.xlu0 %1107, %v360
        %v1109 = vpop.permute.xlu0 %1108
        %1110 = vset.pattern.permute.xlu0 6
        %1111 = vperm.xlu0 %1110, %v361
        %v1112 = vpop.permute.xlu0 %1111
        %1113 = vset.pattern.permute.xlu0 6
        %1114 = vperm.xlu0 %1113, %v362
        %v1115 = vpop.permute.xlu0 %1114
        %1116 = vset.pattern.permute.xlu0 6
        %1117 = vperm.xlu0 %1116, %v363
        %v1118 = vpop.permute.xlu0 %1117
        %1119 = vset.pattern.permute.xlu0 6
        %1120 = vperm.xlu0 %1119, %v364
        %v1121 = vpop.permute.xlu0 %1120
        %vm1122 = vcmp.eq.s32.totalorder %v401, %v1076
        %vm1123 = vcmp.eq.s32.totalorder %v401, %v1079
        %vm1124 = vcmp.eq.s32.totalorder %v401, %v1082
        %vm1125 = vcmp.eq.s32.totalorder %v401, %v1085
        %vm1126 = vcmp.eq.s32.totalorder %v401, %v1088
        %vm1127 = vcmp.eq.s32.totalorder %v401, %v1091
        %vm1128 = vcmp.eq.s32.totalorder %v401, %v1094
        %vm1129 = vcmp.eq.s32.totalorder %v401, %v1097
        %vm1130 = vcmp.eq.s32.totalorder %v401, %v1100
        %vm1131 = vcmp.eq.s32.totalorder %v401, %v1103
        %vm1132 = vcmp.eq.s32.totalorder %v401, %v1106
        %vm1133 = vcmp.eq.s32.totalorder %v401, %v1109
        %vm1134 = vcmp.eq.s32.totalorder %v401, %v1112
        %vm1135 = vcmp.eq.s32.totalorder %v401, %v1115
        %vm1136 = vcmp.eq.s32.totalorder %v401, %v1118
        %vm1137 = vcmp.eq.s32.totalorder %v401, %v1121
        %v1138 = vsel %vm1122, 1, 0
        %v1139 = vsel %vm1123, 1, 0
        %v1140 = vsel %vm1124, 1, 0
        %v1141 = vsel %vm1125, 1, 0
        %v1142 = vsel %vm1126, 1, 0
        %v1143 = vsel %vm1127, 1, 0
        %v1144 = vsel %vm1128, 1, 0
        %v1145 = vsel %vm1129, 1, 0
        %v1146 = vsel %vm1130, 1, 0
        %v1147 = vsel %vm1131, 1, 0
        %v1148 = vsel %vm1132, 1, 0
        %v1149 = vsel %vm1133, 1, 0
        %v1150 = vsel %vm1134, 1, 0
        %v1151 = vsel %vm1135, 1, 0
        %v1152 = vsel %vm1136, 1, 0
        %v1153 = vsel %vm1137, 1, 0
        %v1154 = vcvt.s32.f32 %v1138
        %v1155 = vcvt.s32.f32 %v1139
        %v1156 = vcvt.s32.f32 %v1140
        %v1157 = vcvt.s32.f32 %v1141
        %v1158 = vcvt.s32.f32 %v1142
        %v1159 = vcvt.s32.f32 %v1143
        %v1160 = vcvt.s32.f32 %v1144
        %v1161 = vcvt.s32.f32 %v1145
        %v1162 = vcvt.s32.f32 %v1146
        %v1163 = vcvt.s32.f32 %v1147
        %v1164 = vcvt.s32.f32 %v1148
        %v1165 = vcvt.s32.f32 %v1149
        %v1166 = vcvt.s32.f32 %v1150
        %v1167 = vcvt.s32.f32 %v1151
        %v1168 = vcvt.s32.f32 %v1152
        %v1169 = vcvt.s32.f32 %v1153
        %v1170 = vadd.f32 %v1058, %v1154
        %v1171 = vadd.f32 %v1059, %v1155
        %v1172 = vadd.f32 %v1060, %v1156
        %v1173 = vadd.f32 %v1061, %v1157
        %v1174 = vadd.f32 %v1062, %v1158
        %v1175 = vadd.f32 %v1063, %v1159
        %v1176 = vadd.f32 %v1064, %v1160
        %v1177 = vadd.f32 %v1065, %v1161
        %v1178 = vadd.f32 %v1066, %v1162
        %v1179 = vadd.f32 %v1067, %v1163
        %v1180 = vadd.f32 %v1068, %v1164
        %v1181 = vadd.f32 %v1069, %v1165
        %v1182 = vadd.f32 %v1070, %v1166
        %v1183 = vadd.f32 %v1071, %v1167
        %v1184 = vadd.f32 %v1072, %v1168
        %v1185 = vadd.f32 %v1073, %v1169
        %1186 = vset.pattern.permute.xlu0 7
        %1187 = vperm.xlu0 %1186, %v349
        %v1188 = vpop.permute.xlu0 %1187
        %1189 = vset.pattern.permute.xlu0 7
        %1190 = vperm.xlu0 %1189, %v350
        %v1191 = vpop.permute.xlu0 %1190
        %1192 = vset.pattern.permute.xlu0 7
        %1193 = vperm.xlu0 %1192, %v351
        %v1194 = vpop.permute.xlu0 %1193
        %1195 = vset.pattern.permute.xlu0 7
        %1196 = vperm.xlu0 %1195, %v352
        %v1197 = vpop.permute.xlu0 %1196
        %1198 = vset.pattern.permute.xlu0 7
        %1199 = vperm.xlu0 %1198, %v353
        %v1200 = vpop.permute.xlu0 %1199
        %1201 = vset.pattern.permute.xlu0 7
        %1202 = vperm.xlu0 %1201, %v354
        %v1203 = vpop.permute.xlu0 %1202
        %1204 = vset.pattern.permute.xlu0 7
        %1205 = vperm.xlu0 %1204, %v355
        %v1206 = vpop.permute.xlu0 %1205
        %1207 = vset.pattern.permute.xlu0 7
        %1208 = vperm.xlu0 %1207, %v356
        %v1209 = vpop.permute.xlu0 %1208
        %1210 = vset.pattern.permute.xlu0 7
        %1211 = vperm.xlu0 %1210, %v357
        %v1212 = vpop.permute.xlu0 %1211
        %1213 = vset.pattern.permute.xlu0 7
        %1214 = vperm.xlu0 %1213, %v358
        %v1215 = vpop.permute.xlu0 %1214
        %1216 = vset.pattern.permute.xlu0 7
        %1217 = vperm.xlu0 %1216, %v359
        %v1218 = vpop.permute.xlu0 %1217
        %1219 = vset.pattern.permute.xlu0 7
        %1220 = vperm.xlu0 %1219, %v360
        %v1221 = vpop.permute.xlu0 %1220
        %1222 = vset.pattern.permute.xlu0 7
        %1223 = vperm.xlu0 %1222, %v361
        %v1224 = vpop.permute.xlu0 %1223
        %1225 = vset.pattern.permute.xlu0 7
        %1226 = vperm.xlu0 %1225, %v362
        %v1227 = vpop.permute.xlu0 %1226
        %1228 = vset.pattern.permute.xlu0 7
        %1229 = vperm.xlu0 %1228, %v363
        %v1230 = vpop.permute.xlu0 %1229
        %1231 = vset.pattern.permute.xlu0 7
        %1232 = vperm.xlu0 %1231, %v364
        %v1233 = vpop.permute.xlu0 %1232
        %vm1234 = vcmp.eq.s32.totalorder %v401, %v1188
        %vm1235 = vcmp.eq.s32.totalorder %v401, %v1191
        %vm1236 = vcmp.eq.s32.totalorder %v401, %v1194
        %vm1237 = vcmp.eq.s32.totalorder %v401, %v1197
        %vm1238 = vcmp.eq.s32.totalorder %v401, %v1200
        %vm1239 = vcmp.eq.s32.totalorder %v401, %v1203
        %vm1240 = vcmp.eq.s32.totalorder %v401, %v1206
        %vm1241 = vcmp.eq.s32.totalorder %v401, %v1209
        %vm1242 = vcmp.eq.s32.totalorder %v401, %v1212
        %vm1243 = vcmp.eq.s32.totalorder %v401, %v1215
        %vm1244 = vcmp.eq.s32.totalorder %v401, %v1218
        %vm1245 = vcmp.eq.s32.totalorder %v401, %v1221
        %vm1246 = vcmp.eq.s32.totalorder %v401, %v1224
        %vm1247 = vcmp.eq.s32.totalorder %v401, %v1227
        %vm1248 = vcmp.eq.s32.totalorder %v401, %v1230
        %vm1249 = vcmp.eq.s32.totalorder %v401, %v1233
        %v1250 = vsel %vm1234, 1, 0
        %v1251 = vsel %vm1235, 1, 0
        %v1252 = vsel %vm1236, 1, 0
        %v1253 = vsel %vm1237, 1, 0
        %v1254 = vsel %vm1238, 1, 0
        %v1255 = vsel %vm1239, 1, 0
        %v1256 = vsel %vm1240, 1, 0
        %v1257 = vsel %vm1241, 1, 0
        %v1258 = vsel %vm1242, 1, 0
        %v1259 = vsel %vm1243, 1, 0
        %v1260 = vsel %vm1244, 1, 0
        %v1261 = vsel %vm1245, 1, 0
        %v1262 = vsel %vm1246, 1, 0
        %v1263 = vsel %vm1247, 1, 0
        %v1264 = vsel %vm1248, 1, 0
        %v1265 = vsel %vm1249, 1, 0
        %v1266 = vcvt.s32.f32 %v1250
        %v1267 = vcvt.s32.f32 %v1251
        %v1268 = vcvt.s32.f32 %v1252
        %v1269 = vcvt.s32.f32 %v1253
        %v1270 = vcvt.s32.f32 %v1254
        %v1271 = vcvt.s32.f32 %v1255
        %v1272 = vcvt.s32.f32 %v1256
        %v1273 = vcvt.s32.f32 %v1257
        %v1274 = vcvt.s32.f32 %v1258
        %v1275 = vcvt.s32.f32 %v1259
        %v1276 = vcvt.s32.f32 %v1260
        %v1277 = vcvt.s32.f32 %v1261
        %v1278 = vcvt.s32.f32 %v1262
        %v1279 = vcvt.s32.f32 %v1263
        %v1280 = vcvt.s32.f32 %v1264
        %v1281 = vcvt.s32.f32 %v1265
        %v1282 = vadd.f32 %v1170, %v1266
        %v1283 = vadd.f32 %v1171, %v1267
        %v1284 = vadd.f32 %v1172, %v1268
        %v1285 = vadd.f32 %v1173, %v1269
        %v1286 = vadd.f32 %v1174, %v1270
        %v1287 = vadd.f32 %v1175, %v1271
        %v1288 = vadd.f32 %v1176, %v1272
        %v1289 = vadd.f32 %v1177, %v1273
        %v1290 = vadd.f32 %v1178, %v1274
        %v1291 = vadd.f32 %v1179, %v1275
        %v1292 = vadd.f32 %v1180, %v1276
        %v1293 = vadd.f32 %v1181, %v1277
        %v1294 = vadd.f32 %v1182, %v1278
        %v1295 = vadd.f32 %v1183, %v1279
        %v1296 = vadd.f32 %v1184, %v1280
        %v1297 = vadd.f32 %v1185, %v1281
        %1298 = vset.pattern.permute.xlu0 8
        %1299 = vperm.xlu0 %1298, %v349
        %v1300 = vpop.permute.xlu0 %1299
        %1301 = vset.pattern.permute.xlu0 8
        %1302 = vperm.xlu0 %1301, %v350
        %v1303 = vpop.permute.xlu0 %1302
        %1304 = vset.pattern.permute.xlu0 8
        %1305 = vperm.xlu0 %1304, %v351
        %v1306 = vpop.permute.xlu0 %1305
        %1307 = vset.pattern.permute.xlu0 8
        %1308 = vperm.xlu0 %1307, %v352
        %v1309 = vpop.permute.xlu0 %1308
        %1310 = vset.pattern.permute.xlu0 8
        %1311 = vperm.xlu0 %1310, %v353
        %v1312 = vpop.permute.xlu0 %1311
        %1313 = vset.pattern.permute.xlu0 8
        %1314 = vperm.xlu0 %1313, %v354
        %v1315 = vpop.permute.xlu0 %1314
        %1316 = vset.pattern.permute.xlu0 8
        %1317 = vperm.xlu0 %1316, %v355
        %v1318 = vpop.permute.xlu0 %1317
        %1319 = vset.pattern.permute.xlu0 8
        %1320 = vperm.xlu0 %1319, %v356
        %v1321 = vpop.permute.xlu0 %1320
        %1322 = vset.pattern.permute.xlu0 8
        %1323 = vperm.xlu0 %1322, %v357
        %v1324 = vpop.permute.xlu0 %1323
        %1325 = vset.pattern.permute.xlu0 8
        %1326 = vperm.xlu0 %1325, %v358
        %v1327 = vpop.permute.xlu0 %1326
        %1328 = vset.pattern.permute.xlu0 8
        %1329 = vperm.xlu0 %1328, %v359
        %v1330 = vpop.permute.xlu0 %1329
        %1331 = vset.pattern.permute.xlu0 8
        %1332 = vperm.xlu0 %1331, %v360
        %v1333 = vpop.permute.xlu0 %1332
        %1334 = vset.pattern.permute.xlu0 8
        %1335 = vperm.xlu0 %1334, %v361
        %v1336 = vpop.permute.xlu0 %1335
        %1337 = vset.pattern.permute.xlu0 8
        %1338 = vperm.xlu0 %1337, %v362
        %v1339 = vpop.permute.xlu0 %1338
        %1340 = vset.pattern.permute.xlu0 8
        %1341 = vperm.xlu0 %1340, %v363
        %v1342 = vpop.permute.xlu0 %1341
        %1343 = vset.pattern.permute.xlu0 8
        %1344 = vperm.xlu0 %1343, %v364
        %v1345 = vpop.permute.xlu0 %1344
        %vm1346 = vcmp.eq.s32.totalorder %v401, %v1300
        %vm1347 = vcmp.eq.s32.totalorder %v401, %v1303
        %vm1348 = vcmp.eq.s32.totalorder %v401, %v1306
        %vm1349 = vcmp.eq.s32.totalorder %v401, %v1309
        %vm1350 = vcmp.eq.s32.totalorder %v401, %v1312
        %vm1351 = vcmp.eq.s32.totalorder %v401, %v1315
        %vm1352 = vcmp.eq.s32.totalorder %v401, %v1318
        %vm1353 = vcmp.eq.s32.totalorder %v401, %v1321
        %vm1354 = vcmp.eq.s32.totalorder %v401, %v1324
        %vm1355 = vcmp.eq.s32.totalorder %v401, %v1327
        %vm1356 = vcmp.eq.s32.totalorder %v401, %v1330
        %vm1357 = vcmp.eq.s32.totalorder %v401, %v1333
        %vm1358 = vcmp.eq.s32.totalorder %v401, %v1336
        %vm1359 = vcmp.eq.s32.totalorder %v401, %v1339
        %vm1360 = vcmp.eq.s32.totalorder %v401, %v1342
        %vm1361 = vcmp.eq.s32.totalorder %v401, %v1345
        %v1362 = vsel %vm1346, 1, 0
        %v1363 = vsel %vm1347, 1, 0
        %v1364 = vsel %vm1348, 1, 0
        %v1365 = vsel %vm1349, 1, 0
        %v1366 = vsel %vm1350, 1, 0
        %v1367 = vsel %vm1351, 1, 0
        %v1368 = vsel %vm1352, 1, 0
        %v1369 = vsel %vm1353, 1, 0
        %v1370 = vsel %vm1354, 1, 0
        %v1371 = vsel %vm1355, 1, 0
        %v1372 = vsel %vm1356, 1, 0
        %v1373 = vsel %vm1357, 1, 0
        %v1374 = vsel %vm1358, 1, 0
        %v1375 = vsel %vm1359, 1, 0
        %v1376 = vsel %vm1360, 1, 0
        %v1377 = vsel %vm1361, 1, 0
        %v1378 = vcvt.s32.f32 %v1362
        %v1379 = vcvt.s32.f32 %v1363
        %v1380 = vcvt.s32.f32 %v1364
        %v1381 = vcvt.s32.f32 %v1365
        %v1382 = vcvt.s32.f32 %v1366
        %v1383 = vcvt.s32.f32 %v1367
        %v1384 = vcvt.s32.f32 %v1368
        %v1385 = vcvt.s32.f32 %v1369
        %v1386 = vcvt.s32.f32 %v1370
        %v1387 = vcvt.s32.f32 %v1371
        %v1388 = vcvt.s32.f32 %v1372
        %v1389 = vcvt.s32.f32 %v1373
        %v1390 = vcvt.s32.f32 %v1374
        %v1391 = vcvt.s32.f32 %v1375
        %v1392 = vcvt.s32.f32 %v1376
        %v1393 = vcvt.s32.f32 %v1377
        %v1394 = vadd.f32 %v1282, %v1378
        %v1395 = vadd.f32 %v1283, %v1379
        %v1396 = vadd.f32 %v1284, %v1380
        %v1397 = vadd.f32 %v1285, %v1381
        %v1398 = vadd.f32 %v1286, %v1382
        %v1399 = vadd.f32 %v1287, %v1383
        %v1400 = vadd.f32 %v1288, %v1384
        %v1401 = vadd.f32 %v1289, %v1385
        %v1402 = vadd.f32 %v1290, %v1386
        %v1403 = vadd.f32 %v1291, %v1387
        %v1404 = vadd.f32 %v1292, %v1388
        %v1405 = vadd.f32 %v1293, %v1389
        %v1406 = vadd.f32 %v1294, %v1390
        %v1407 = vadd.f32 %v1295, %v1391
        %v1408 = vadd.f32 %v1296, %v1392
        %v1409 = vadd.f32 %v1297, %v1393
        %vm1410 = vcmp.eq.s32.totalorder %v401, %v384
        %vm1411 = vcmp.eq.s32.totalorder %v401, %v385
        %vm1412 = vcmp.eq.s32.totalorder %v401, %v386
        %vm1413 = vcmp.eq.s32.totalorder %v401, %v387
        %vm1414 = vcmp.eq.s32.totalorder %v401, %v388
        %vm1415 = vcmp.eq.s32.totalorder %v401, %v389
        %vm1416 = vcmp.eq.s32.totalorder %v401, %v390
        %vm1417 = vcmp.eq.s32.totalorder %v401, %v391
        %vm1418 = vcmp.eq.s32.totalorder %v401, %v392
        %vm1419 = vcmp.eq.s32.totalorder %v401, %v393
        %vm1420 = vcmp.eq.s32.totalorder %v401, %v394
        %vm1421 = vcmp.eq.s32.totalorder %v401, %v395
        %vm1422 = vcmp.eq.s32.totalorder %v401, %v396
        %vm1423 = vcmp.eq.s32.totalorder %v401, %v397
        %vm1424 = vcmp.eq.s32.totalorder %v401, %v398
        %vm1425 = vcmp.eq.s32.totalorder %v401, %v399
        %v1426 = vsel %vm1410, 0.0, %v1394
        %v1427 = vsel %vm1411, 0.0, %v1395
        %v1428 = vsel %vm1412, 0.0, %v1396
        %v1429 = vsel %vm1413, 0.0, %v1397
        %v1430 = vsel %vm1414, 0.0, %v1398
        %v1431 = vsel %vm1415, 0.0, %v1399
        %v1432 = vsel %vm1416, 0.0, %v1400
        %v1433 = vsel %vm1417, 0.0, %v1401
        %v1434 = vsel %vm1418, 0.0, %v1402
        %v1435 = vsel %vm1419, 0.0, %v1403
        %v1436 = vsel %vm1420, 0.0, %v1404
        %v1437 = vsel %vm1421, 0.0, %v1405
        %v1438 = vsel %vm1422, 0.0, %v1406
        %v1439 = vsel %vm1423, 0.0, %v1407
        %v1440 = vsel %vm1424, 0.0, %v1408
        %v1441 = vsel %vm1425, 0.0, %v1409
        %v1442 = vld [vmem:[%s277] sm:$0xf]
        %v1443 = vld [vmem:[%s277 + $0x4] sm:$0xf]
        %v1444 = vld [vmem:[%s277 + $0x8] sm:$0xf]
        %v1445 = vld [vmem:[%s277 + $0xc] sm:$0xf]
        %v1446 = vld [vmem:[%s277 + $0x10] sm:$0xf]
        %v1447 = vld [vmem:[%s277 + $0x14] sm:$0xf]
        %v1448 = vld [vmem:[%s277 + $0x18] sm:$0xf]
        %v1449 = vld [vmem:[%s277 + $0x1c] sm:$0xf]
        %v1450 = vld [vmem:[%s277 + $0x20] sm:$0xf]
        %v1451 = vld [vmem:[%s277 + $0x24] sm:$0xf]
        %v1452 = vld [vmem:[%s277 + $0x28] sm:$0xf]
        %v1453 = vld [vmem:[%s277 + $0x2c] sm:$0xf]
        %v1454 = vld [vmem:[%s277 + $0x30] sm:$0xf]
        %v1455 = vld [vmem:[%s277 + $0x34] sm:$0xf]
        %v1456 = vld [vmem:[%s277 + $0x38] sm:$0xf]
        %v1457 = vld [vmem:[%s277 + $0x3c] sm:$0xf]
        %v1458 = vpack.c.bf16 %v1427, %v1426
        %v1459 = vpack.c.bf16 %v1429, %v1428
        %v1460 = vpack.c.bf16 %v1431, %v1430
        %v1461 = vpack.c.bf16 %v1433, %v1432
        %v1462 = vpack.c.bf16 %v1435, %v1434
        %v1463 = vpack.c.bf16 %v1437, %v1436
        %v1464 = vpack.c.bf16 %v1439, %v1438
        %v1465 = vpack.c.bf16 %v1441, %v1440
        %v1466 = vadd.s32 %v401, 128
        %vm1467 = vcmp.eq.s32.totalorder %v1466, %v404
        %vm1468 = vcmp.eq.s32.totalorder %v1466, %v407
        %vm1469 = vcmp.eq.s32.totalorder %v1466, %v410
        %vm1470 = vcmp.eq.s32.totalorder %v1466, %v413
        %vm1471 = vcmp.eq.s32.totalorder %v1466, %v416
        %vm1472 = vcmp.eq.s32.totalorder %v1466, %v419
        %vm1473 = vcmp.eq.s32.totalorder %v1466, %v422
        %vm1474 = vcmp.eq.s32.totalorder %v1466, %v425
        %vm1475 = vcmp.eq.s32.totalorder %v1466, %v428
        %vm1476 = vcmp.eq.s32.totalorder %v1466, %v431
        %vm1477 = vcmp.eq.s32.totalorder %v1466, %v434
        %vm1478 = vcmp.eq.s32.totalorder %v1466, %v437
        %vm1479 = vcmp.eq.s32.totalorder %v1466, %v440
        %vm1480 = vcmp.eq.s32.totalorder %v1466, %v443
        %vm1481 = vcmp.eq.s32.totalorder %v1466, %v446
        %vm1482 = vcmp.eq.s32.totalorder %v1466, %v449
        %v1483 = vsel %vm1467, 1, 0
        %v1484 = vsel %vm1468, 1, 0
        %v1485 = vsel %vm1469, 1, 0
        %v1486 = vsel %vm1470, 1, 0
        %v1487 = vsel %vm1471, 1, 0
        %v1488 = vsel %vm1472, 1, 0
        %v1489 = vsel %vm1473, 1, 0
        %v1490 = vsel %vm1474, 1, 0
        %v1491 = vsel %vm1475, 1, 0
        %v1492 = vsel %vm1476, 1, 0
        %v1493 = vsel %vm1477, 1, 0
        %v1494 = vsel %vm1478, 1, 0
        %v1495 = vsel %vm1479, 1, 0
        %v1496 = vsel %vm1480, 1, 0
        %v1497 = vsel %vm1481, 1, 0
        %v1498 = vsel %vm1482, 1, 0
        %v1499 = vcvt.s32.f32 %v1483
        %v1500 = vcvt.s32.f32 %v1484
        %v1501 = vcvt.s32.f32 %v1485
        %v1502 = vcvt.s32.f32 %v1486
        %v1503 = vcvt.s32.f32 %v1487
        %v1504 = vcvt.s32.f32 %v1488
        %v1505 = vcvt.s32.f32 %v1489
        %v1506 = vcvt.s32.f32 %v1490
        %v1507 = vcvt.s32.f32 %v1491
        %v1508 = vcvt.s32.f32 %v1492
        %v1509 = vcvt.s32.f32 %v1493
        %v1510 = vcvt.s32.f32 %v1494
        %v1511 = vcvt.s32.f32 %v1495
        %v1512 = vcvt.s32.f32 %v1496
        %v1513 = vcvt.s32.f32 %v1497
        %v1514 = vcvt.s32.f32 %v1498
        %v1515 = vadd.f32 %v1499, 0.0
        %v1516 = vadd.f32 %v1500, 0.0
        %v1517 = vadd.f32 %v1501, 0.0
        %v1518 = vadd.f32 %v1502, 0.0
        %v1519 = vadd.f32 %v1503, 0.0
        %v1520 = vadd.f32 %v1504, 0.0
        %v1521 = vadd.f32 %v1505, 0.0
        %v1522 = vadd.f32 %v1506, 0.0
        %v1523 = vadd.f32 %v1507, 0.0
        %v1524 = vadd.f32 %v1508, 0.0
        %v1525 = vadd.f32 %v1509, 0.0
        %v1526 = vadd.f32 %v1510, 0.0
        %v1527 = vadd.f32 %v1511, 0.0
        %v1528 = vadd.f32 %v1512, 0.0
        %v1529 = vadd.f32 %v1513, 0.0
        %v1530 = vadd.f32 %v1514, 0.0
        %vm1531 = vcmp.eq.s32.totalorder %v1466, %v516
        %vm1532 = vcmp.eq.s32.totalorder %v1466, %v519
        %vm1533 = vcmp.eq.s32.totalorder %v1466, %v522
        %vm1534 = vcmp.eq.s32.totalorder %v1466, %v525
        %vm1535 = vcmp.eq.s32.totalorder %v1466, %v528
        %vm1536 = vcmp.eq.s32.totalorder %v1466, %v531
        %vm1537 = vcmp.eq.s32.totalorder %v1466, %v534
        %vm1538 = vcmp.eq.s32.totalorder %v1466, %v537
        %vm1539 = vcmp.eq.s32.totalorder %v1466, %v540
        %vm1540 = vcmp.eq.s32.totalorder %v1466, %v543
        %vm1541 = vcmp.eq.s32.totalorder %v1466, %v546
        %vm1542 = vcmp.eq.s32.totalorder %v1466, %v549
        %vm1543 = vcmp.eq.s32.totalorder %v1466, %v552
        %vm1544 = vcmp.eq.s32.totalorder %v1466, %v555
        %vm1545 = vcmp.eq.s32.totalorder %v1466, %v558
        %vm1546 = vcmp.eq.s32.totalorder %v1466, %v561
        %v1547 = vsel %vm1531, 1, 0
        %v1548 = vsel %vm1532, 1, 0
        %v1549 = vsel %vm1533, 1, 0
        %v1550 = vsel %vm1534, 1, 0
        %v1551 = vsel %vm1535, 1, 0
        %v1552 = vsel %vm1536, 1, 0
        %v1553 = vsel %vm1537, 1, 0
        %v1554 = vsel %vm1538, 1, 0
        %v1555 = vsel %vm1539, 1, 0
        %v1556 = vsel %vm1540, 1, 0
        %v1557 = vsel %vm1541, 1, 0
        %v1558 = vsel %vm1542, 1, 0
        %v1559 = vsel %vm1543, 1, 0
        %v1560 = vsel %vm1544, 1, 0
        %v1561 = vsel %vm1545, 1, 0
        %v1562 = vsel %vm1546, 1, 0
        %v1563 = vcvt.s32.f32 %v1547
        %v1564 = vcvt.s32.f32 %v1548
        %v1565 = vcvt.s32.f32 %v1549
        %v1566 = vcvt.s32.f32 %v1550
        %v1567 = vcvt.s32.f32 %v1551
        %v1568 = vcvt.s32.f32 %v1552
        %v1569 = vcvt.s32.f32 %v1553
        %v1570 = vcvt.s32.f32 %v1554
        %v1571 = vcvt.s32.f32 %v1555
        %v1572 = vcvt.s32.f32 %v1556
        %v1573 = vcvt.s32.f32 %v1557
        %v1574 = vcvt.s32.f32 %v1558
        %v1575 = vcvt.s32.f32 %v1559
        %v1576 = vcvt.s32.f32 %v1560
        %v1577 = vcvt.s32.f32 %v1561
        %v1578 = vcvt.s32.f32 %v1562
        %v1579 = vadd.f32 %v1515, %v1563
        %v1580 = vadd.f32 %v1516, %v1564
        %v1581 = vadd.f32 %v1517, %v1565
        %v1582 = vadd.f32 %v1518, %v1566
        %v1583 = vadd.f32 %v1519, %v1567
        %v1584 = vadd.f32 %v1520, %v1568
        %v1585 = vadd.f32 %v1521, %v1569
        %v1586 = vadd.f32 %v1522, %v1570
        %v1587 = vadd.f32 %v1523, %v1571
        %v1588 = vadd.f32 %v1524, %v1572
        %v1589 = vadd.f32 %v1525, %v1573
        %v1590 = vadd.f32 %v1526, %v1574
        %v1591 = vadd.f32 %v1527, %v1575
        %v1592 = vadd.f32 %v1528, %v1576
        %v1593 = vadd.f32 %v1529, %v1577
        %v1594 = vadd.f32 %v1530, %v1578
        %vm1595 = vcmp.eq.s32.totalorder %v1466, %v628
        %vm1596 = vcmp.eq.s32.totalorder %v1466, %v631
        %vm1597 = vcmp.eq.s32.totalorder %v1466, %v634
        %vm1598 = vcmp.eq.s32.totalorder %v1466, %v637
        %vm1599 = vcmp.eq.s32.totalorder %v1466, %v640
        %vm1600 = vcmp.eq.s32.totalorder %v1466, %v643
        %vm1601 = vcmp.eq.s32.totalorder %v1466, %v646
        %vm1602 = vcmp.eq.s32.totalorder %v1466, %v649
        %vm1603 = vcmp.eq.s32.totalorder %v1466, %v652
        %vm1604 = vcmp.eq.s32.totalorder %v1466, %v655
        %vm1605 = vcmp.eq.s32.totalorder %v1466, %v658
        %vm1606 = vcmp.eq.s32.totalorder %v1466, %v661
        %vm1607 = vcmp.eq.s32.totalorder %v1466, %v664
        %vm1608 = vcmp.eq.s32.totalorder %v1466, %v667
        %vm1609 = vcmp.eq.s32.totalorder %v1466, %v670
        %vm1610 = vcmp.eq.s32.totalorder %v1466, %v673
        %v1611 = vsel %vm1595, 1, 0
        %v1612 = vsel %vm1596, 1, 0
        %v1613 = vsel %vm1597, 1, 0
        %v1614 = vsel %vm1598, 1, 0
        %v1615 = vsel %vm1599, 1, 0
        %v1616 = vsel %vm1600, 1, 0
        %v1617 = vsel %vm1601, 1, 0
        %v1618 = vsel %vm1602, 1, 0
        %v1619 = vsel %vm1603, 1, 0
        %v1620 = vsel %vm1604, 1, 0
        %v1621 = vsel %vm1605, 1, 0
        %v1622 = vsel %vm1606, 1, 0
        %v1623 = vsel %vm1607, 1, 0
        %v1624 = vsel %vm1608, 1, 0
        %v1625 = vsel %vm1609, 1, 0
        %v1626 = vsel %vm1610, 1, 0
        %v1627 = vcvt.s32.f32 %v1611
        %v1628 = vcvt.s32.f32 %v1612
        %v1629 = vcvt.s32.f32 %v1613
        %v1630 = vcvt.s32.f32 %v1614
        %v1631 = vcvt.s32.f32 %v1615
        %v1632 = vcvt.s32.f32 %v1616
        %v1633 = vcvt.s32.f32 %v1617
        %v1634 = vcvt.s32.f32 %v1618
        %v1635 = vcvt.s32.f32 %v1619
        %v1636 = vcvt.s32.f32 %v1620
        %v1637 = vcvt.s32.f32 %v1621
        %v1638 = vcvt.s32.f32 %v1622
        %v1639 = vcvt.s32.f32 %v1623
        %v1640 = vcvt.s32.f32 %v1624
        %v1641 = vcvt.s32.f32 %v1625
        %v1642 = vcvt.s32.f32 %v1626
        %v1643 = vadd.f32 %v1579, %v1627
        %v1644 = vadd.f32 %v1580, %v1628
        %v1645 = vadd.f32 %v1581, %v1629
        %v1646 = vadd.f32 %v1582, %v1630
        %v1647 = vadd.f32 %v1583, %v1631
        %v1648 = vadd.f32 %v1584, %v1632
        %v1649 = vadd.f32 %v1585, %v1633
        %v1650 = vadd.f32 %v1586, %v1634
        %v1651 = vadd.f32 %v1587, %v1635
        %v1652 = vadd.f32 %v1588, %v1636
        %v1653 = vadd.f32 %v1589, %v1637
        %v1654 = vadd.f32 %v1590, %v1638
        %v1655 = vadd.f32 %v1591, %v1639
        %v1656 = vadd.f32 %v1592, %v1640
        %v1657 = vadd.f32 %v1593, %v1641
        %v1658 = vadd.f32 %v1594, %v1642
        %vm1659 = vcmp.eq.s32.totalorder %v1466, %v740
        %vm1660 = vcmp.eq.s32.totalorder %v1466, %v743
        %vm1661 = vcmp.eq.s32.totalorder %v1466, %v746
        %vm1662 = vcmp.eq.s32.totalorder %v1466, %v749
        %vm1663 = vcmp.eq.s32.totalorder %v1466, %v752
        %vm1664 = vcmp.eq.s32.totalorder %v1466, %v755
        %vm1665 = vcmp.eq.s32.totalorder %v1466, %v758
        %vm1666 = vcmp.eq.s32.totalorder %v1466, %v761
        %vm1667 = vcmp.eq.s32.totalorder %v1466, %v764
        %vm1668 = vcmp.eq.s32.totalorder %v1466, %v767
        %vm1669 = vcmp.eq.s32.totalorder %v1466, %v770
        %vm1670 = vcmp.eq.s32.totalorder %v1466, %v773
        %vm1671 = vcmp.eq.s32.totalorder %v1466, %v776
        %vm1672 = vcmp.eq.s32.totalorder %v1466, %v779
        %vm1673 = vcmp.eq.s32.totalorder %v1466, %v782
        %vm1674 = vcmp.eq.s32.totalorder %v1466, %v785
        %v1675 = vsel %vm1659, 1, 0
        %v1676 = vsel %vm1660, 1, 0
        %v1677 = vsel %vm1661, 1, 0
        %v1678 = vsel %vm1662, 1, 0
        %v1679 = vsel %vm1663, 1, 0
        %v1680 = vsel %vm1664, 1, 0
        %v1681 = vsel %vm1665, 1, 0
        %v1682 = vsel %vm1666, 1, 0
        %v1683 = vsel %vm1667, 1, 0
        %v1684 = vsel %vm1668, 1, 0
        %v1685 = vsel %vm1669, 1, 0
        %v1686 = vsel %vm1670, 1, 0
        %v1687 = vsel %vm1671, 1, 0
        %v1688 = vsel %vm1672, 1, 0
        %v1689 = vsel %vm1673, 1, 0
        %v1690 = vsel %vm1674, 1, 0
        %v1691 = vcvt.s32.f32 %v1675
        %v1692 = vcvt.s32.f32 %v1676
        %v1693 = vcvt.s32.f32 %v1677
        %v1694 = vcvt.s32.f32 %v1678
        %v1695 = vcvt.s32.f32 %v1679
        %v1696 = vcvt.s32.f32 %v1680
        %v1697 = vcvt.s32.f32 %v1681
        %v1698 = vcvt.s32.f32 %v1682
        %v1699 = vcvt.s32.f32 %v1683
        %v1700 = vcvt.s32.f32 %v1684
        %v1701 = vcvt.s32.f32 %v1685
        %v1702 = vcvt.s32.f32 %v1686
        %v1703 = vcvt.s32.f32 %v1687
        %v1704 = vcvt.s32.f32 %v1688
        %v1705 = vcvt.s32.f32 %v1689
        %v1706 = vcvt.s32.f32 %v1690
        %v1707 = vadd.f32 %v1643, %v1691
        %v1708 = vadd.f32 %v1644, %v1692
        %v1709 = vadd.f32 %v1645, %v1693
        %v1710 = vadd.f32 %v1646, %v1694
        %v1711 = vadd.f32 %v1647, %v1695
        %v1712 = vadd.f32 %v1648, %v1696
        %v1713 = vadd.f32 %v1649, %v1697
        %v1714 = vadd.f32 %v1650, %v1698
        %v1715 = vadd.f32 %v1651, %v1699
        %v1716 = vadd.f32 %v1652, %v1700
        %v1717 = vadd.f32 %v1653, %v1701
        %v1718 = vadd.f32 %v1654, %v1702
        %v1719 = vadd.f32 %v1655, %v1703
        %v1720 = vadd.f32 %v1656, %v1704
        %v1721 = vadd.f32 %v1657, %v1705
        %v1722 = vadd.f32 %v1658, %v1706
        %vm1723 = vcmp.eq.s32.totalorder %v1466, %v852
        %vm1724 = vcmp.eq.s32.totalorder %v1466, %v855
        %vm1725 = vcmp.eq.s32.totalorder %v1466, %v858
        %vm1726 = vcmp.eq.s32.totalorder %v1466, %v861
        %vm1727 = vcmp.eq.s32.totalorder %v1466, %v864
        %vm1728 = vcmp.eq.s32.totalorder %v1466, %v867
        %vm1729 = vcmp.eq.s32.totalorder %v1466, %v870
        %vm1730 = vcmp.eq.s32.totalorder %v1466, %v873
        %vm1731 = vcmp.eq.s32.totalorder %v1466, %v876
        %vm1732 = vcmp.eq.s32.totalorder %v1466, %v879
        %vm1733 = vcmp.eq.s32.totalorder %v1466, %v882
        %vm1734 = vcmp.eq.s32.totalorder %v1466, %v885
        %vm1735 = vcmp.eq.s32.totalorder %v1466, %v888
        %vm1736 = vcmp.eq.s32.totalorder %v1466, %v891
        %vm1737 = vcmp.eq.s32.totalorder %v1466, %v894
        %vm1738 = vcmp.eq.s32.totalorder %v1466, %v897
        %v1739 = vsel %vm1723, 1, 0
        %v1740 = vsel %vm1724, 1, 0
        %v1741 = vsel %vm1725, 1, 0
        %v1742 = vsel %vm1726, 1, 0
        %v1743 = vsel %vm1727, 1, 0
        %v1744 = vsel %vm1728, 1, 0
        %v1745 = vsel %vm1729, 1, 0
        %v1746 = vsel %vm1730, 1, 0
        %v1747 = vsel %vm1731, 1, 0
        %v1748 = vsel %vm1732, 1, 0
        %v1749 = vsel %vm1733, 1, 0
        %v1750 = vsel %vm1734, 1, 0
        %v1751 = vsel %vm1735, 1, 0
        %v1752 = vsel %vm1736, 1, 0
        %v1753 = vsel %vm1737, 1, 0
        %v1754 = vsel %vm1738, 1, 0
        %v1755 = vcvt.s32.f32 %v1739
        %v1756 = vcvt.s32.f32 %v1740
        %v1757 = vcvt.s32.f32 %v1741
        %v1758 = vcvt.s32.f32 %v1742
        %v1759 = vcvt.s32.f32 %v1743
        %v1760 = vcvt.s32.f32 %v1744
        %v1761 = vcvt.s32.f32 %v1745
        %v1762 = vcvt.s32.f32 %v1746
        %v1763 = vcvt.s32.f32 %v1747
        %v1764 = vcvt.s32.f32 %v1748
        %v1765 = vcvt.s32.f32 %v1749
        %v1766 = vcvt.s32.f32 %v1750
        %v1767 = vcvt.s32.f32 %v1751
        %v1768 = vcvt.s32.f32 %v1752
        %v1769 = vcvt.s32.f32 %v1753
        %v1770 = vcvt.s32.f32 %v1754
        %v1771 = vadd.f32 %v1707, %v1755
        %v1772 = vadd.f32 %v1708, %v1756
        %v1773 = vadd.f32 %v1709, %v1757
        %v1774 = vadd.f32 %v1710, %v1758
        %v1775 = vadd.f32 %v1711, %v1759
        %v1776 = vadd.f32 %v1712, %v1760
        %v1777 = vadd.f32 %v1713, %v1761
        %v1778 = vadd.f32 %v1714, %v1762
        %v1779 = vadd.f32 %v1715, %v1763
        %v1780 = vadd.f32 %v1716, %v1764
        %v1781 = vadd.f32 %v1717, %v1765
        %v1782 = vadd.f32 %v1718, %v1766
        %v1783 = vadd.f32 %v1719, %v1767
        %v1784 = vadd.f32 %v1720, %v1768
        %v1785 = vadd.f32 %v1721, %v1769
        %v1786 = vadd.f32 %v1722, %v1770
        %vm1787 = vcmp.eq.s32.totalorder %v1466, %v964
        %vm1788 = vcmp.eq.s32.totalorder %v1466, %v967
        %vm1789 = vcmp.eq.s32.totalorder %v1466, %v970
        %vm1790 = vcmp.eq.s32.totalorder %v1466, %v973
        %vm1791 = vcmp.eq.s32.totalorder %v1466, %v976
        %vm1792 = vcmp.eq.s32.totalorder %v1466, %v979
        %vm1793 = vcmp.eq.s32.totalorder %v1466, %v982
        %vm1794 = vcmp.eq.s32.totalorder %v1466, %v985
        %vm1795 = vcmp.eq.s32.totalorder %v1466, %v988
        %vm1796 = vcmp.eq.s32.totalorder %v1466, %v991
        %vm1797 = vcmp.eq.s32.totalorder %v1466, %v994
        %vm1798 = vcmp.eq.s32.totalorder %v1466, %v997
        %vm1799 = vcmp.eq.s32.totalorder %v1466, %v1000
        %vm1800 = vcmp.eq.s32.totalorder %v1466, %v1003
        %vm1801 = vcmp.eq.s32.totalorder %v1466, %v1006
        %vm1802 = vcmp.eq.s32.totalorder %v1466, %v1009
        %v1803 = vsel %vm1787, 1, 0
        %v1804 = vsel %vm1788, 1, 0
        %v1805 = vsel %vm1789, 1, 0
        %v1806 = vsel %vm1790, 1, 0
        %v1807 = vsel %vm1791, 1, 0
        %v1808 = vsel %vm1792, 1, 0
        %v1809 = vsel %vm1793, 1, 0
        %v1810 = vsel %vm1794, 1, 0
        %v1811 = vsel %vm1795, 1, 0
        %v1812 = vsel %vm1796, 1, 0
        %v1813 = vsel %vm1797, 1, 0
        %v1814 = vsel %vm1798, 1, 0
        %v1815 = vsel %vm1799, 1, 0
        %v1816 = vsel %vm1800, 1, 0
        %v1817 = vsel %vm1801, 1, 0
        %v1818 = vsel %vm1802, 1, 0
        %v1819 = vcvt.s32.f32 %v1803
        %v1820 = vcvt.s32.f32 %v1804
        %v1821 = vcvt.s32.f32 %v1805
        %v1822 = vcvt.s32.f32 %v1806
        %v1823 = vcvt.s32.f32 %v1807
        %v1824 = vcvt.s32.f32 %v1808
        %v1825 = vcvt.s32.f32 %v1809
        %v1826 = vcvt.s32.f32 %v1810
        %v1827 = vcvt.s32.f32 %v1811
        %v1828 = vcvt.s32.f32 %v1812
        %v1829 = vcvt.s32.f32 %v1813
        %v1830 = vcvt.s32.f32 %v1814
        %v1831 = vcvt.s32.f32 %v1815
        %v1832 = vcvt.s32.f32 %v1816
        %v1833 = vcvt.s32.f32 %v1817
        %v1834 = vcvt.s32.f32 %v1818
        %v1835 = vadd.f32 %v1771, %v1819
        %v1836 = vadd.f32 %v1772, %v1820
        %v1837 = vadd.f32 %v1773, %v1821
        %v1838 = vadd.f32 %v1774, %v1822
        %v1839 = vadd.f32 %v1775, %v1823
        %v1840 = vadd.f32 %v1776, %v1824
        %v1841 = vadd.f32 %v1777, %v1825
        %v1842 = vadd.f32 %v1778, %v1826
        %v1843 = vadd.f32 %v1779, %v1827
        %v1844 = vadd.f32 %v1780, %v1828
        %v1845 = vadd.f32 %v1781, %v1829
        %v1846 = vadd.f32 %v1782, %v1830
        %v1847 = vadd.f32 %v1783, %v1831
        %v1848 = vadd.f32 %v1784, %v1832
        %v1849 = vadd.f32 %v1785, %v1833
        %v1850 = vadd.f32 %v1786, %v1834
        %vm1851 = vcmp.eq.s32.totalorder %v1466, %v1076
        %vm1852 = vcmp.eq.s32.totalorder %v1466, %v1079
        %vm1853 = vcmp.eq.s32.totalorder %v1466, %v1082
        %vm1854 = vcmp.eq.s32.totalorder %v1466, %v1085
        %vm1855 = vcmp.eq.s32.totalorder %v1466, %v1088
        %vm1856 = vcmp.eq.s32.totalorder %v1466, %v1091
        %vm1857 = vcmp.eq.s32.totalorder %v1466, %v1094
        %vm1858 = vcmp.eq.s32.totalorder %v1466, %v1097
        %vm1859 = vcmp.eq.s32.totalorder %v1466, %v1100
        %vm1860 = vcmp.eq.s32.totalorder %v1466, %v1103
        %vm1861 = vcmp.eq.s32.totalorder %v1466, %v1106
        %vm1862 = vcmp.eq.s32.totalorder %v1466, %v1109
        %vm1863 = vcmp.eq.s32.totalorder %v1466, %v1112
        %vm1864 = vcmp.eq.s32.totalorder %v1466, %v1115
        %vm1865 = vcmp.eq.s32.totalorder %v1466, %v1118
        %vm1866 = vcmp.eq.s32.totalorder %v1466, %v1121
        %v1867 = vsel %vm1851, 1, 0
        %v1868 = vsel %vm1852, 1, 0
        %v1869 = vsel %vm1853, 1, 0
        %v1870 = vsel %vm1854, 1, 0
        %v1871 = vsel %vm1855, 1, 0
        %v1872 = vsel %vm1856, 1, 0
        %v1873 = vsel %vm1857, 1, 0
        %v1874 = vsel %vm1858, 1, 0
        %v1875 = vsel %vm1859, 1, 0
        %v1876 = vsel %vm1860, 1, 0
        %v1877 = vsel %vm1861, 1, 0
        %v1878 = vsel %vm1862, 1, 0
        %v1879 = vsel %vm1863, 1, 0
        %v1880 = vsel %vm1864, 1, 0
        %v1881 = vsel %vm1865, 1, 0
        %v1882 = vsel %vm1866, 1, 0
        %v1883 = vcvt.s32.f32 %v1867
        %v1884 = vcvt.s32.f32 %v1868
        %v1885 = vcvt.s32.f32 %v1869
        %v1886 = vcvt.s32.f32 %v1870
        %v1887 = vcvt.s32.f32 %v1871
        %v1888 = vcvt.s32.f32 %v1872
        %v1889 = vcvt.s32.f32 %v1873
        %v1890 = vcvt.s32.f32 %v1874
        %v1891 = vcvt.s32.f32 %v1875
        %v1892 = vcvt.s32.f32 %v1876
        %v1893 = vcvt.s32.f32 %v1877
        %v1894 = vcvt.s32.f32 %v1878
        %v1895 = vcvt.s32.f32 %v1879
        %v1896 = vcvt.s32.f32 %v1880
        %v1897 = vcvt.s32.f32 %v1881
        %v1898 = vcvt.s32.f32 %v1882
        %v1899 = vadd.f32 %v1835, %v1883
        %v1900 = vadd.f32 %v1836, %v1884
        %v1901 = vadd.f32 %v1837, %v1885
        %v1902 = vadd.f32 %v1838, %v1886
        %v1903 = vadd.f32 %v1839, %v1887
        %v1904 = vadd.f32 %v1840, %v1888
        %v1905 = vadd.f32 %v1841, %v1889
        %v1906 = vadd.f32 %v1842, %v1890
        %v1907 = vadd.f32 %v1843, %v1891
        %v1908 = vadd.f32 %v1844, %v1892
        %v1909 = vadd.f32 %v1845, %v1893
        %v1910 = vadd.f32 %v1846, %v1894
        %v1911 = vadd.f32 %v1847, %v1895
        %v1912 = vadd.f32 %v1848, %v1896
        %v1913 = vadd.f32 %v1849, %v1897
        %v1914 = vadd.f32 %v1850, %v1898
        %vm1915 = vcmp.eq.s32.totalorder %v1466, %v1188
        %vm1916 = vcmp.eq.s32.totalorder %v1466, %v1191
        %vm1917 = vcmp.eq.s32.totalorder %v1466, %v1194
        %vm1918 = vcmp.eq.s32.totalorder %v1466, %v1197
        %vm1919 = vcmp.eq.s32.totalorder %v1466, %v1200
        %vm1920 = vcmp.eq.s32.totalorder %v1466, %v1203
        %vm1921 = vcmp.eq.s32.totalorder %v1466, %v1206
        %vm1922 = vcmp.eq.s32.totalorder %v1466, %v1209
        %vm1923 = vcmp.eq.s32.totalorder %v1466, %v1212
        %vm1924 = vcmp.eq.s32.totalorder %v1466, %v1215
        %vm1925 = vcmp.eq.s32.totalorder %v1466, %v1218
        %vm1926 = vcmp.eq.s32.totalorder %v1466, %v1221
        %vm1927 = vcmp.eq.s32.totalorder %v1466, %v1224
        %vm1928 = vcmp.eq.s32.totalorder %v1466, %v1227
        %vm1929 = vcmp.eq.s32.totalorder %v1466, %v1230
        %vm1930 = vcmp.eq.s32.totalorder %v1466, %v1233
        %v1931 = vsel %vm1915, 1, 0
        %v1932 = vsel %vm1916, 1, 0
        %v1933 = vsel %vm1917, 1, 0
        %v1934 = vsel %vm1918, 1, 0
        %v1935 = vsel %vm1919, 1, 0
        %v1936 = vsel %vm1920, 1, 0
        %v1937 = vsel %vm1921, 1, 0
        %v1938 = vsel %vm1922, 1, 0
        %v1939 = vsel %vm1923, 1, 0
        %v1940 = vsel %vm1924, 1, 0
        %v1941 = vsel %vm1925, 1, 0
        %v1942 = vsel %vm1926, 1, 0
        %v1943 = vsel %vm1927, 1, 0
        %v1944 = vsel %vm1928, 1, 0
        %v1945 = vsel %vm1929, 1, 0
        %v1946 = vsel %vm1930, 1, 0
        %v1947 = vcvt.s32.f32 %v1931
        %v1948 = vcvt.s32.f32 %v1932
        %v1949 = vcvt.s32.f32 %v1933
        %v1950 = vcvt.s32.f32 %v1934
        %v1951 = vcvt.s32.f32 %v1935
        %v1952 = vcvt.s32.f32 %v1936
        %v1953 = vcvt.s32.f32 %v1937
        %v1954 = vcvt.s32.f32 %v1938
        %v1955 = vcvt.s32.f32 %v1939
        %v1956 = vcvt.s32.f32 %v1940
        %v1957 = vcvt.s32.f32 %v1941
        %v1958 = vcvt.s32.f32 %v1942
        %v1959 = vcvt.s32.f32 %v1943
        %v1960 = vcvt.s32.f32 %v1944
        %v1961 = vcvt.s32.f32 %v1945
        %v1962 = vcvt.s32.f32 %v1946
        %v1963 = vadd.f32 %v1899, %v1947
        %v1964 = vadd.f32 %v1900, %v1948
        %v1965 = vadd.f32 %v1901, %v1949
        %v1966 = vadd.f32 %v1902, %v1950
        %v1967 = vadd.f32 %v1903, %v1951
        %v1968 = vadd.f32 %v1904, %v1952
        %v1969 = vadd.f32 %v1905, %v1953
        %v1970 = vadd.f32 %v1906, %v1954
        %v1971 = vadd.f32 %v1907, %v1955
        %v1972 = vadd.f32 %v1908, %v1956
        %v1973 = vadd.f32 %v1909, %v1957
        %v1974 = vadd.f32 %v1910, %v1958
        %v1975 = vadd.f32 %v1911, %v1959
        %v1976 = vadd.f32 %v1912, %v1960
        %v1977 = vadd.f32 %v1913, %v1961
        %v1978 = vadd.f32 %v1914, %v1962
        %vm1979 = vcmp.eq.s32.totalorder %v1466, %v1300
        %vm1980 = vcmp.eq.s32.totalorder %v1466, %v1303
        %vm1981 = vcmp.eq.s32.totalorder %v1466, %v1306
        %vm1982 = vcmp.eq.s32.totalorder %v1466, %v1309
        %vm1983 = vcmp.eq.s32.totalorder %v1466, %v1312
        %vm1984 = vcmp.eq.s32.totalorder %v1466, %v1315
        %vm1985 = vcmp.eq.s32.totalorder %v1466, %v1318
        %vm1986 = vcmp.eq.s32.totalorder %v1466, %v1321
        %vm1987 = vcmp.eq.s32.totalorder %v1466, %v1324
        %vm1988 = vcmp.eq.s32.totalorder %v1466, %v1327
        %vm1989 = vcmp.eq.s32.totalorder %v1466, %v1330
        %vm1990 = vcmp.eq.s32.totalorder %v1466, %v1333
        %vm1991 = vcmp.eq.s32.totalorder %v1466, %v1336
        %vm1992 = vcmp.eq.s32.totalorder %v1466, %v1339
        %vm1993 = vcmp.eq.s32.totalorder %v1466, %v1342
        %vm1994 = vcmp.eq.s32.totalorder %v1466, %v1345
        %v1995 = vsel %vm1979, 1, 0
        %v1996 = vsel %vm1980, 1, 0
        %v1997 = vsel %vm1981, 1, 0
        %v1998 = vsel %vm1982, 1, 0
        %v1999 = vsel %vm1983, 1, 0
        %v2000 = vsel %vm1984, 1, 0
        %v2001 = vsel %vm1985, 1, 0
        %v2002 = vsel %vm1986, 1, 0
        %v2003 = vsel %vm1987, 1, 0
        %v2004 = vsel %vm1988, 1, 0
        %v2005 = vsel %vm1989, 1, 0
        %v2006 = vsel %vm1990, 1, 0
        %v2007 = vsel %vm1991, 1, 0
        %v2008 = vsel %vm1992, 1, 0
        %v2009 = vsel %vm1993, 1, 0
        %v2010 = vsel %vm1994, 1, 0
        %v2011 = vcvt.s32.f32 %v1995
        %v2012 = vcvt.s32.f32 %v1996
        %v2013 = vcvt.s32.f32 %v1997
        %v2014 = vcvt.s32.f32 %v1998
        %v2015 = vcvt.s32.f32 %v1999
        %v2016 = vcvt.s32.f32 %v2000
        %v2017 = vcvt.s32.f32 %v2001
        %v2018 = vcvt.s32.f32 %v2002
        %v2019 = vcvt.s32.f32 %v2003
        %v2020 = vcvt.s32.f32 %v2004
        %v2021 = vcvt.s32.f32 %v2005
        %v2022 = vcvt.s32.f32 %v2006
        %v2023 = vcvt.s32.f32 %v2007
        %v2024 = vcvt.s32.f32 %v2008
        %v2025 = vcvt.s32.f32 %v2009
        %v2026 = vcvt.s32.f32 %v2010
        %v2027 = vadd.f32 %v1963, %v2011
        %v2028 = vadd.f32 %v1964, %v2012
        %v2029 = vadd.f32 %v1965, %v2013
        %v2030 = vadd.f32 %v1966, %v2014
        %v2031 = vadd.f32 %v1967, %v2015
        %v2032 = vadd.f32 %v1968, %v2016
        %v2033 = vadd.f32 %v1969, %v2017
        %v2034 = vadd.f32 %v1970, %v2018
        %v2035 = vadd.f32 %v1971, %v2019
        %v2036 = vadd.f32 %v1972, %v2020
        %v2037 = vadd.f32 %v1973, %v2021
        %v2038 = vadd.f32 %v1974, %v2022
        %v2039 = vadd.f32 %v1975, %v2023
        %v2040 = vadd.f32 %v1976, %v2024
        %v2041 = vadd.f32 %v1977, %v2025
        %v2042 = vadd.f32 %v1978, %v2026
        %vm2043 = vcmp.eq.s32.totalorder %v1466, %v384
        %vm2044 = vcmp.eq.s32.totalorder %v1466, %v385
        %vm2045 = vcmp.eq.s32.totalorder %v1466, %v386
        %vm2046 = vcmp.eq.s32.totalorder %v1466, %v387
        %vm2047 = vcmp.eq.s32.totalorder %v1466, %v388
        %vm2048 = vcmp.eq.s32.totalorder %v1466, %v389
        %vm2049 = vcmp.eq.s32.totalorder %v1466, %v390
        %vm2050 = vcmp.eq.s32.totalorder %v1466, %v391
        %vm2051 = vcmp.eq.s32.totalorder %v1466, %v392
        %vm2052 = vcmp.eq.s32.totalorder %v1466, %v393
        %vm2053 = vcmp.eq.s32.totalorder %v1466, %v394
        %vm2054 = vcmp.eq.s32.totalorder %v1466, %v395
        %vm2055 = vcmp.eq.s32.totalorder %v1466, %v396
        %vm2056 = vcmp.eq.s32.totalorder %v1466, %v397
        %vm2057 = vcmp.eq.s32.totalorder %v1466, %v398
        %vm2058 = vcmp.eq.s32.totalorder %v1466, %v399
        %v2059 = vsel %vm2043, 0.0, %v2027
        %v2060 = vsel %vm2044, 0.0, %v2028
        %v2061 = vsel %vm2045, 0.0, %v2029
        %v2062 = vsel %vm2046, 0.0, %v2030
        %v2063 = vsel %vm2047, 0.0, %v2031
        %v2064 = vsel %vm2048, 0.0, %v2032
        %v2065 = vsel %vm2049, 0.0, %v2033
        %v2066 = vsel %vm2050, 0.0, %v2034
        %v2067 = vsel %vm2051, 0.0, %v2035
        %v2068 = vsel %vm2052, 0.0, %v2036
        %v2069 = vsel %vm2053, 0.0, %v2037
        %v2070 = vsel %vm2054, 0.0, %v2038
        %v2071 = vsel %vm2055, 0.0, %v2039
        %v2072 = vsel %vm2056, 0.0, %v2040
        %v2073 = vsel %vm2057, 0.0, %v2041
        %v2074 = vsel %vm2058, 0.0, %v2042
        %v2075 = vld [vmem:[%s277 + $0x40] sm:$0xf]
        %v2076 = vld [vmem:[%s277 + $0x44] sm:$0xf]
        %v2077 = vld [vmem:[%s277 + $0x48] sm:$0xf]
        %v2078 = vld [vmem:[%s277 + $0x4c] sm:$0xf]
        %v2079 = vld [vmem:[%s277 + $0x50] sm:$0xf]
        %v2080 = vld [vmem:[%s277 + $0x54] sm:$0xf]
        %v2081 = vld [vmem:[%s277 + $0x58] sm:$0xf]
        %v2082 = vld [vmem:[%s277 + $0x5c] sm:$0xf]
        %v2083 = vld [vmem:[%s277 + $0x60] sm:$0xf]
        %v2084 = vld [vmem:[%s277 + $0x64] sm:$0xf]
        %v2085 = vld [vmem:[%s277 + $0x68] sm:$0xf]
        %v2086 = vld [vmem:[%s277 + $0x6c] sm:$0xf]
        %v2087 = vld [vmem:[%s277 + $0x70] sm:$0xf]
        %v2088 = vld [vmem:[%s277 + $0x74] sm:$0xf]
        %v2089 = vld [vmem:[%s277 + $0x78] sm:$0xf]
        %v2090 = vld [vmem:[%s277 + $0x7c] sm:$0xf]
        %v2091 = vpack.c.bf16 %v2060, %v2059
        %v2092 = vpack.c.bf16 %v2062, %v2061
        %v2093 = vpack.c.bf16 %v2064, %v2063
        %v2094 = vpack.c.bf16 %v2066, %v2065
        %v2095 = vpack.c.bf16 %v2068, %v2067
        %v2096 = vpack.c.bf16 %v2070, %v2069
        %v2097 = vpack.c.bf16 %v2072, %v2071
        %v2098 = vpack.c.bf16 %v2074, %v2073
        %v2115 = vunpack.c.l.b16 %v2075
        %v2116 = vunpack.c.l.b16 %v2076
        %v2117 = vunpack.c.l.b16 %v2077
        %v2118 = vunpack.c.l.b16 %v2078
        %v2119 = vunpack.c.l.b16 %v2079
        %v2120 = vunpack.c.l.b16 %v2080
        %v2121 = vunpack.c.l.b16 %v2081
        %v2122 = vunpack.c.l.b16 %v2082
        %v2123 = vunpack.c.l.b16 %v2083
        %v2124 = vunpack.c.l.b16 %v2084
        %v2125 = vunpack.c.l.b16 %v2085
        %v2126 = vunpack.c.l.b16 %v2086
        %v2127 = vunpack.c.l.b16 %v2087
        %v2128 = vunpack.c.l.b16 %v2088
        %v2129 = vunpack.c.l.b16 %v2089
        %v2130 = vunpack.c.l.b16 %v2090
        %v2131 = vpack.c.b16 %v2116, %v2115
        %v2132 = vpack.c.b16 %v2118, %v2117
        %v2133 = vpack.c.b16 %v2120, %v2119
        %v2134 = vpack.c.b16 %v2122, %v2121
        %v2135 = vpack.c.b16 %v2124, %v2123
        %v2136 = vpack.c.b16 %v2126, %v2125
        %v2137 = vpack.c.b16 %v2128, %v2127
        %v2138 = vpack.c.b16 %v2130, %v2129
        %2147 = vmatpush.bf16.msra.mxu0 %v2138
        %2148 = vmatpush.bf16.msra.mxu0 %v2137
        %2149 = vmatpush.bf16.msra.mxu0 %v2136
        %2150 = vmatpush.bf16.msra.mxu0 %v2135
        %2151 = vmatpush.bf16.msra.mxu0 %v2134
        %2152 = vmatpush.bf16.msra.mxu0 %v2133
        %2153 = vmatpush.bf16.msra.mxu0 %v2132
        %2154 = vmatpush.bf16.msra.mxu0 %v2131
        %2155 = vmatmul.bf16.gmra.mxu0 %v2091
        %v2156 = vpop.f32.mrf.mxu0
        %v2157 = vadd.f32 0.0, %v2156
        %v2158 = vpop.f32.mrf.mxu0
        %v2159 = vadd.f32 0.0, %v2158
        %2160 = vmatmul.bf16.gmra.mxu0 %v2092
        %v2161 = vpop.f32.mrf.mxu0
        %v2162 = vadd.f32 0.0, %v2161
        %v2163 = vpop.f32.mrf.mxu0
        %v2164 = vadd.f32 0.0, %v2163
        %2165 = vmatmul.bf16.gmra.mxu0 %v2093
        %v2166 = vpop.f32.mrf.mxu0
        %v2167 = vadd.f32 0.0, %v2166
        %v2168 = vpop.f32.mrf.mxu0
        %v2169 = vadd.f32 0.0, %v2168
        %2170 = vmatmul.bf16.gmra.mxu0 %v2094
        %v2171 = vpop.f32.mrf.mxu0
        %v2172 = vadd.f32 0.0, %v2171
        %v2173 = vpop.f32.mrf.mxu0
        %v2174 = vadd.f32 0.0, %v2173
        %2175 = vmatmul.bf16.gmra.mxu0 %v2095
        %v2176 = vpop.f32.mrf.mxu0
        %v2177 = vadd.f32 0.0, %v2176
        %v2178 = vpop.f32.mrf.mxu0
        %v2179 = vadd.f32 0.0, %v2178
        %2180 = vmatmul.bf16.gmra.mxu0 %v2096
        %v2181 = vpop.f32.mrf.mxu0
        %v2182 = vadd.f32 0.0, %v2181
        %v2183 = vpop.f32.mrf.mxu0
        %v2184 = vadd.f32 0.0, %v2183
        %2185 = vmatmul.bf16.gmra.mxu0 %v2097
        %v2186 = vpop.f32.mrf.mxu0
        %v2187 = vadd.f32 0.0, %v2186
        %v2188 = vpop.f32.mrf.mxu0
        %v2189 = vadd.f32 0.0, %v2188
        %2190 = vmatmul.bf16.gmra.mxu0 %v2098
        %v2191 = vpop.f32.mrf.mxu0
        %v2192 = vadd.f32 0.0, %v2191
        %v2193 = vpop.f32.mrf.mxu0
        %v2194 = vadd.f32 0.0, %v2193
        %2195 = vdwg.mxu0
        %v2212 = vunpack.c.l.b16 %v1442
        %v2213 = vunpack.c.l.b16 %v1443
        %v2214 = vunpack.c.l.b16 %v1444
        %v2215 = vunpack.c.l.b16 %v1445
        %v2216 = vunpack.c.l.b16 %v1446
        %v2217 = vunpack.c.l.b16 %v1447
        %v2218 = vunpack.c.l.b16 %v1448
        %v2219 = vunpack.c.l.b16 %v1449
        %v2220 = vunpack.c.l.b16 %v1450
        %v2221 = vunpack.c.l.b16 %v1451
        %v2222 = vunpack.c.l.b16 %v1452
        %v2223 = vunpack.c.l.b16 %v1453
        %v2224 = vunpack.c.l.b16 %v1454
        %v2225 = vunpack.c.l.b16 %v1455
        %v2226 = vunpack.c.l.b16 %v1456
        %v2227 = vunpack.c.l.b16 %v1457
        %v2228 = vpack.c.b16 %v2213, %v2212
        %v2229 = vpack.c.b16 %v2215, %v2214
        %v2230 = vpack.c.b16 %v2217, %v2216
        %v2231 = vpack.c.b16 %v2219, %v2218
        %v2232 = vpack.c.b16 %v2221, %v2220
        %v2233 = vpack.c.b16 %v2223, %v2222
        %v2234 = vpack.c.b16 %v2225, %v2224
        %v2235 = vpack.c.b16 %v2227, %v2226
        %2244 = vmatpush.bf16.msra.mxu0 %v2235
        %2245 = vmatpush.bf16.msra.mxu0 %v2234
        %2246 = vmatpush.bf16.msra.mxu0 %v2233
        %2247 = vmatpush.bf16.msra.mxu0 %v2232
        %2248 = vmatpush.bf16.msra.mxu0 %v2231
        %2249 = vmatpush.bf16.msra.mxu0 %v2230
        %2250 = vmatpush.bf16.msra.mxu0 %v2229
        %2251 = vmatpush.bf16.msra.mxu0 %v2228
        %2252 = vmatmul.bf16.gmra.mxu0 %v1458
        %v2253 = vpop.f32.mrf.mxu0
        %v2254 = vadd.f32 %v2157, %v2253
        %v2255 = vpop.f32.mrf.mxu0
        %v2256 = vadd.f32 %v2159, %v2255
        %2257 = vmatmul.bf16.gmra.mxu0 %v1459
        %v2258 = vpop.f32.mrf.mxu0
        %v2259 = vadd.f32 %v2162, %v2258
        %v2260 = vpop.f32.mrf.mxu0
        %v2261 = vadd.f32 %v2164, %v2260
        %2262 = vmatmul.bf16.gmra.mxu0 %v1460
        %v2263 = vpop.f32.mrf.mxu0
        %v2264 = vadd.f32 %v2167, %v2263
        %v2265 = vpop.f32.mrf.mxu0
        %v2266 = vadd.f32 %v2169, %v2265
        %2267 = vmatmul.bf16.gmra.mxu0 %v1461
        %v2268 = vpop.f32.mrf.mxu0
        %v2269 = vadd.f32 %v2172, %v2268
        %v2270 = vpop.f32.mrf.mxu0
        %v2271 = vadd.f32 %v2174, %v2270
        %2272 = vmatmul.bf16.gmra.mxu0 %v1462
        %v2273 = vpop.f32.mrf.mxu0
        %v2274 = vadd.f32 %v2177, %v2273
        %v2275 = vpop.f32.mrf.mxu0
        %v2276 = vadd.f32 %v2179, %v2275
        %2277 = vmatmul.bf16.gmra.mxu0 %v1463
        %v2278 = vpop.f32.mrf.mxu0
        %v2279 = vadd.f32 %v2182, %v2278
        %v2280 = vpop.f32.mrf.mxu0
        %v2281 = vadd.f32 %v2184, %v2280
        %2282 = vmatmul.bf16.gmra.mxu0 %v1464
        %v2283 = vpop.f32.mrf.mxu0
        %v2284 = vadd.f32 %v2187, %v2283
        %v2285 = vpop.f32.mrf.mxu0
        %v2286 = vadd.f32 %v2189, %v2285
        %2287 = vmatmul.bf16.gmra.mxu0 %v1465
        %v2288 = vpop.f32.mrf.mxu0
        %v2289 = vadd.f32 %v2192, %v2288
        %v2290 = vpop.f32.mrf.mxu0
        %v2291 = vadd.f32 %v2194, %v2290
        %2292 = vdwg.mxu0
        %v2293 = vld [vmem:[%s336] sm:$0xff]
        %v2294 = vld [vmem:[%s336 + $0x8] sm:$0xff]
        %v2295 = vld [vmem:[%s336 + $0x10] sm:$0xff]
        %v2296 = vld [vmem:[%s336 + $0x18] sm:$0xff]
        %v2297 = vld [vmem:[%s336 + $0x20] sm:$0xff]
        %v2298 = vld [vmem:[%s336 + $0x28] sm:$0xff]
        %v2299 = vld [vmem:[%s336 + $0x30] sm:$0xff]
        %v2300 = vld [vmem:[%s336 + $0x38] sm:$0xff]
        %v2301 = vld [vmem:[%s336 + $0x40] sm:$0xff]
        %v2302 = vld [vmem:[%s336 + $0x48] sm:$0xff]
        %v2303 = vld [vmem:[%s336 + $0x50] sm:$0xff]
        %v2304 = vld [vmem:[%s336 + $0x58] sm:$0xff]
        %v2305 = vld [vmem:[%s336 + $0x60] sm:$0xff]
        %v2306 = vld [vmem:[%s336 + $0x68] sm:$0xff]
        %v2307 = vld [vmem:[%s336 + $0x70] sm:$0xff]
        %v2308 = vld [vmem:[%s336 + $0x78] sm:$0xff]
        %v2309 = vadd.f32 %v2293, %v2254
        %v2310 = vadd.f32 %v2294, %v2256
        %v2311 = vadd.f32 %v2295, %v2259
        %v2312 = vadd.f32 %v2296, %v2261
        %v2313 = vadd.f32 %v2297, %v2264
        %v2314 = vadd.f32 %v2298, %v2266
        %v2315 = vadd.f32 %v2299, %v2269
        %v2316 = vadd.f32 %v2300, %v2271
        %v2317 = vadd.f32 %v2301, %v2274
        %v2318 = vadd.f32 %v2302, %v2276
        %v2319 = vadd.f32 %v2303, %v2279
        %v2320 = vadd.f32 %v2304, %v2281
        %v2321 = vadd.f32 %v2305, %v2284
        %v2322 = vadd.f32 %v2306, %v2286
        %v2323 = vadd.f32 %v2307, %v2289
        %v2324 = vadd.f32 %v2308, %v2291
        %v2325 = vld [vmem:[#allocation5] sm:$0xff]
        %v2326 = vld [vmem:[#allocation5 + $0x8] sm:$0xff]
        %v2327 = vld [vmem:[#allocation5 + $0x10] sm:$0xff]
        %v2328 = vld [vmem:[#allocation5 + $0x18] sm:$0xff]
        %v2329 = vld [vmem:[#allocation5 + $0x20] sm:$0xff]
        %v2330 = vld [vmem:[#allocation5 + $0x28] sm:$0xff]
        %v2331 = vld [vmem:[#allocation5 + $0x30] sm:$0xff]
        %v2332 = vld [vmem:[#allocation5 + $0x38] sm:$0xff]
        %v2333 = vld [vmem:[#allocation5 + $0x40] sm:$0xff]
        %v2334 = vld [vmem:[#allocation5 + $0x48] sm:$0xff]
        %v2335 = vld [vmem:[#allocation5 + $0x50] sm:$0xff]
        %v2336 = vld [vmem:[#allocation5 + $0x58] sm:$0xff]
        %v2337 = vld [vmem:[#allocation5 + $0x60] sm:$0xff]
        %v2338 = vld [vmem:[#allocation5 + $0x68] sm:$0xff]
        %v2339 = vld [vmem:[#allocation5 + $0x70] sm:$0xff]
        %v2340 = vld [vmem:[#allocation5 + $0x78] sm:$0xff]
        %v2341 = vld [vmem:[%s4] sm:$0x1]
        %v2343 = vperm.slane %v2341, 0
        %2345 = vmatpush.msra.mxu0 %v2340
        %2346 = vmatpush.msra.mxu0 %v2339
        %2347 = vmatpush.msra.mxu0 %v2338
        %2348 = vmatpush.msra.mxu0 %v2337
        %2349 = vmatpush.msra.mxu0 %v2336
        %2350 = vmatpush.msra.mxu0 %v2335
        %2351 = vmatpush.msra.mxu0 %v2334
        %2352 = vmatpush.msra.mxu0 %v2333
        %2353 = vmatpush.msra.mxu0 %v2332
        %2354 = vmatpush.msra.mxu0 %v2331
        %2355 = vmatpush.msra.mxu0 %v2330
        %2356 = vmatpush.msra.mxu0 %v2329
        %2357 = vmatpush.msra.mxu0 %v2328
        %2358 = vmatpush.msra.mxu0 %v2327
        %2359 = vmatpush.msra.mxu0 %v2326
        %2360 = vmatpush.msra.mxu0 %v2325
        %2361 = vmatmul.f32.gmra.mxu0 %v2309
        %v2362 = vpop.f32.mrf.mxu0
        %v2363 = vadd.f32 %v2343, %v2362
        %2364 = vmatmul.f32.gmra.mxu0 %v2310
        %v2365 = vpop.f32.mrf.mxu0
        %v2366 = vadd.f32 %v2343, %v2365
        %2367 = vmatmul.f32.gmra.mxu0 %v2311
        %v2368 = vpop.f32.mrf.mxu0
        %v2369 = vadd.f32 %v2343, %v2368
        %2370 = vmatmul.f32.gmra.mxu0 %v2312
        %v2371 = vpop.f32.mrf.mxu0
        %v2372 = vadd.f32 %v2343, %v2371
        %2373 = vmatmul.f32.gmra.mxu0 %v2313
        %v2374 = vpop.f32.mrf.mxu0
        %v2375 = vadd.f32 %v2343, %v2374
        %2376 = vmatmul.f32.gmra.mxu0 %v2314
        %v2377 = vpop.f32.mrf.mxu0
        %v2378 = vadd.f32 %v2343, %v2377
        %2379 = vmatmul.f32.gmra.mxu0 %v2315
        %v2380 = vpop.f32.mrf.mxu0
        %v2381 = vadd.f32 %v2343, %v2380
        %2382 = vmatmul.f32.gmra.mxu0 %v2316
        %v2383 = vpop.f32.mrf.mxu0
        %v2384 = vadd.f32 %v2343, %v2383
        %2385 = vmatmul.f32.gmra.mxu0 %v2317
        %v2386 = vpop.f32.mrf.mxu0
        %v2387 = vadd.f32 %v2343, %v2386
        %2388 = vmatmul.f32.gmra.mxu0 %v2318
        %v2389 = vpop.f32.mrf.mxu0
        %v2390 = vadd.f32 %v2343, %v2389
        %2391 = vmatmul.f32.gmra.mxu0 %v2319
        %v2392 = vpop.f32.mrf.mxu0
        %v2393 = vadd.f32 %v2343, %v2392
        %2394 = vmatmul.f32.gmra.mxu0 %v2320
        %v2395 = vpop.f32.mrf.mxu0
        %v2396 = vadd.f32 %v2343, %v2395
        %2397 = vmatmul.f32.gmra.mxu0 %v2321
        %v2398 = vpop.f32.mrf.mxu0
        %v2399 = vadd.f32 %v2343, %v2398
        %2400 = vmatmul.f32.gmra.mxu0 %v2322
        %v2401 = vpop.f32.mrf.mxu0
        %v2402 = vadd.f32 %v2343, %v2401
        %2403 = vmatmul.f32.gmra.mxu0 %v2323
        %v2404 = vpop.f32.mrf.mxu0
        %v2405 = vadd.f32 %v2343, %v2404
        %2406 = vmatmul.f32.gmra.mxu0 %v2324
        %v2407 = vpop.f32.mrf.mxu0
        %v2408 = vadd.f32 %v2343, %v2407
        %2409 = vdwg.mxu0
        %v2410 = vmax.f32 %v2363, 0.0
        %v2411 = vmax.f32 %v2366, 0.0
        %v2412 = vmax.f32 %v2369, 0.0
        %v2413 = vmax.f32 %v2372, 0.0
        %v2414 = vmax.f32 %v2375, 0.0
        %v2415 = vmax.f32 %v2378, 0.0
        %v2416 = vmax.f32 %v2381, 0.0
        %v2417 = vmax.f32 %v2384, 0.0
        %v2418 = vmax.f32 %v2387, 0.0
        %v2419 = vmax.f32 %v2390, 0.0
        %v2420 = vmax.f32 %v2393, 0.0
        %v2421 = vmax.f32 %v2396, 0.0
        %v2422 = vmax.f32 %v2399, 0.0
        %v2423 = vmax.f32 %v2402, 0.0
        %v2424 = vmax.f32 %v2405, 0.0
        %v2425 = vmax.f32 %v2408, 0.0
        %v2426 = vadd.f32 %v2410, %v2293
        %v2427 = vadd.f32 %v2411, %v2294
        %v2428 = vadd.f32 %v2412, %v2295
        %v2429 = vadd.f32 %v2413, %v2296
        %v2430 = vadd.f32 %v2414, %v2297
        %v2431 = vadd.f32 %v2415, %v2298
        %v2432 = vadd.f32 %v2416, %v2299
        %v2433 = vadd.f32 %v2417, %v2300
        %v2434 = vadd.f32 %v2418, %v2301
        %v2435 = vadd.f32 %v2419, %v2302
        %v2436 = vadd.f32 %v2420, %v2303
        %v2437 = vadd.f32 %v2421, %v2304
        %v2438 = vadd.f32 %v2422, %v2305
        %v2439 = vadd.f32 %v2423, %v2306
        %v2440 = vadd.f32 %v2424, %v2307
        %v2441 = vadd.f32 %v2425, %v2308
        %2442 = vst [vmem:[%s327] sm:$0xff] %v2426
        %2443 = vst [vmem:[%s327 + $0x8] sm:$0xff] %v2427
        %2444 = vst [vmem:[%s327 + $0x10] sm:$0xff] %v2428
        %2445 = vst [vmem:[%s327 + $0x18] sm:$0xff] %v2429
        %2446 = vst [vmem:[%s327 + $0x20] sm:$0xff] %v2430
        %2447 = vst [vmem:[%s327 + $0x28] sm:$0xff] %v2431
        %2448 = vst [vmem:[%s327 + $0x30] sm:$0xff] %v2432
        %2449 = vst [vmem:[%s327 + $0x38] sm:$0xff] %v2433
        %2450 = vst [vmem:[%s327 + $0x40] sm:$0xff] %v2434
        %2451 = vst [vmem:[%s327 + $0x48] sm:$0xff] %v2435
        %2452 = vst [vmem:[%s327 + $0x50] sm:$0xff] %v2436
        %2453 = vst [vmem:[%s327 + $0x58] sm:$0xff] %v2437
        %2454 = vst [vmem:[%s327 + $0x60] sm:$0xff] %v2438
        %2455 = vst [vmem:[%s327 + $0x68] sm:$0xff] %v2439
        %2456 = vst [vmem:[%s327 + $0x70] sm:$0xff] %v2440
        %2457 = vst [vmem:[%s327 + $0x78] sm:$0xff] %v2441
        %s2458 = sand.u32 %s169, 1
        %s2459 = scalar_lea.sflag [#allocation4], %s2458
        %s2460 = sand.u32 %s169, 1
        %s2461 = smul.addr %s2460, 128
        %s2462 = scalar_lea.vmem [#allocation7], %s2461
        // Predicated region
        $region49: #{tpu_custom_call.1} parent=39 // pred_check
          %p2463 = pneg %p179
        $region50: #{tpu_custom_call.1} parent=39 // pred_check_branch
          %2465 = sbr.rel (%p2463) target = $region52
        $region51: #{tpu_custom_call.1} parent=39 // pred_region
          %s2466 = smul.u32 16, %s28
          %2468 = vsyncadd %s2459, 0
          %s2469 = smul.addr %s27, 32
          %s2470 = sadd.s32 %s2466, %s2469
          %s2471 = smul.addr %s2470, 8
          %s2472 = scalar_lea.hbm %s5, %s2471
          %s2473 = sshll.u32 %s2462, 4
          %s2474 = int_to_ptr.vmem [resolvable:$true] %s2473
          %s2475 = sshll.u32 %s2472, 4
          %s2476 = int_to_ptr.hbm [resolvable:$true] %s2475
          %2481 = dma.vmem_to_hbm [thread:$0]  %s2474, 2048, %s2476, %s2459, 128, 128, 8
        $region52: #{tpu_custom_call.1} parent=39 // pred_fallthru
          _
      $region40: #{tpu_custom_call.1} parent=5 // pred_fallthru
        _
      %p2482 = scmp.le.s32.totalorder 2, %s18
      // Predicated region
      $region53: #{tpu_custom_call.1} parent=5 // pred_check
        %p2483 = pneg %p2482
      $region54: #{tpu_custom_call.1} parent=5 // pred_check_branch
        %2485 = sbr.rel (%p2483) target = $region56
      $region55: #{tpu_custom_call.1} parent=5 // pred_region
        %s2486 = ssub.s32 %s18, 2
        // Predicated region
        $region57: #{tpu_custom_call.1} parent=55 // pred_check
          %p2487 = pneg %p185
        $region58: #{tpu_custom_call.1} parent=55 // pred_check_branch
          %2489 = sbr.rel (%p2487) target = $region60
        $region59: #{tpu_custom_call.1} parent=55 // pred_region
          %s2490 = sand.u32 %s170, 1
          %s2491 = scalar_lea.sflag [#allocation4], %s2490
          %s2492 = sand.u32 %s170, 1
          %s2493 = smul.addr %s2492, 128
          %s2494 = scalar_lea.vmem [#allocation7], %s2493
          %2496 = dma.done %s2491, 2048
        $region60: #{tpu_custom_call.1} parent=55 // pred_fallthru
          _
      $region56: #{tpu_custom_call.1} parent=5 // pred_fallthru
        _
    $region6: #{tpu_custom_call.1} parent=1 // loop_footer
      %s22 = sadd.s32 1, %s18
    $region7: #{tpu_custom_call.1} parent=1 // loop_footer_branch
      %17 = sbr.rel target = $region3
    $region8: #{tpu_custom_call.1} parent=1 // loop_exit
      _
    %2497 = vsyncpa [#allocation3], 1
    %s2498 = scalar_lea.sflag [#allocation3], 1
    %2499 = vsyncpa %s2498, 1
    %2500 = vsyncpa [#allocation6], 1
    %2501 = vsyncpa [#allocation4], 1
    %s2502 = scalar_lea.sflag [#allocation4], 1
    %2503 = vsyncpa %s2502, 1

</llo_original>
